<compile_context>
chip_gen: v7x
topology: tpu7x:2x2x1
jax: 0.10.0
libtpu: 0.0.40
codegen_flags: <defaults>
</compile_context>

<pallas_src>
import functools

import jax
import jax.numpy as jnp
from jax.experimental import pallas as pl
from jax.experimental.pallas import tpu as pltpu

_LANE = 128
_SUBLANE = 8


def _round_up(x, m):
    return (x + m - 1) // m * m


def _largest_divisor_leq(n, cap):
    cap = max(1, min(n, cap))
    for d in range(cap, 0, -1):
        if n % d == 0:
            return d
    return 1


def _vmem_capacity_bytes():
    try:
        return int(pltpu.get_tpu_info().vmem_capacity_bytes)
    except Exception:
        return 64 * 1024 * 1024  # conservative: v7x per-TensorCore VMEM


def _probe_buffered_support():
    try:
        pl.BlockSpec((_SUBLANE, _LANE), lambda i: (0, 0),
                     pipeline_mode=pl.Buffered(1))
        return True
    except Exception:
        return False


_HAS_BUFFERED = _probe_buffered_support()


def _spec(shape, index_map, *, buffers=None):
    """BlockSpec; single/multi-buffered via pipeline_mode when supported."""
    if buffers is not None and _HAS_BUFFERED:
        return pl.BlockSpec(shape, index_map, pipeline_mode=pl.Buffered(buffers))
    return pl.BlockSpec(shape, index_map)


def _head_kernel(x_ref, w_ref, b_ref, o_ref, acc_ref):
    """One (batch-tile, K-tile) step of sigmoid(x @ W + b).

    x_ref:   (tb, tk)    lane-dense flattened feature slab (f32 or bf16)
    w_ref:   (tk, c_pad) HW-expanded, 1/(H*W)-scaled weight
    b_ref:   (1, c_pad)  f32 bias
    o_ref:   (tb, c_pad) f32 output
    acc_ref: (tb, c_pad) f32 accumulator, persists across the K grid axis
    """
    k = pl.program_id(1)

    @pl.when(k == 0)
    def _init():
        acc_ref[...] = jnp.zeros_like(acc_ref)

    # The global-average-pool is absorbed into this matmul (weight pre-scaled
    # by 1/(H*W) and repeated H*W times along K) -> pure MXU work, f32 acc.
    acc_ref[...] += jnp.dot(x_ref[...], w_ref[...],
                            preferred_element_type=jnp.float32)

    @pl.when(k == pl.num_programs(1) - 1)
    def _finalize():
        z = acc_ref[...] + b_ref[...]
        o_ref[...] = (1.0 / (1.0 + jnp.exp(-z))).astype(o_ref.dtype)


def prepare_head_params(weight, bias, H, W, *, param_dtype=jnp.float32):
    """One-time prep of the Linear(1024, c) params for the fused head kernel.

    Folds the AdaptiveAvgPool2d(1) mean (1/(H*W)) into the weight, transposes,
    pads the output dim to a multiple of 128 lanes, and repeats each channel
    row H*W times so it matches the flattened (B, C*H*W) NCHW feature layout.
    Returns (w_expanded (C*H*W, c_pad), bias (1, c_pad) f32, c_out).
    """
    c_out, C = weight.shape
    HW = H * W
    c_pad = _round_up(c_out, _LANE)
    w = weight.astype(jnp.float32).T / jnp.float32(HW)          # (C, c_out)
    w = jnp.pad(w, ((0, 0), (0, c_pad - c_out)))                # (C, c_pad)
    w = jnp.repeat(w, HW, axis=0).astype(param_dtype)           # (C*HW, c_pad)
    b = jnp.pad(bias.astype(jnp.float32), (0, c_pad - c_out)).reshape(1, c_pad)
    return w, b, c_out


def planet_densenet_head(x_nchw, w_exp, b_pad, c_out, *,
                         max_resident_weight_bytes=None):
    """sigmoid(Linear(mean_{H,W}(x))) for an NCHW feature map.

    x_nchw: (B, C, H, W); w_exp/b_pad come from prepare_head_params().
    """
    B, C, H, W = x_nchw.shape
    K, c_pad = w_exp.shape
    if K != C * H * W:
        raise ValueError("w_exp does not match the feature-map shape")

    x = x_nchw.reshape(B, K)             # free, contiguous NCHW reshape
    x_item = x.dtype.itemsize
    w_item = w_exp.dtype.itemsize

    # ---- VMEM planning (lane-dense, so logical bytes == physical bytes) ----
    vmem_cap = _vmem_capacity_bytes()
    vmem_limit = min(vmem_cap - 8 * 1024 * 1024, int(vmem_cap * 0.85))
    vmem_limit = max(vmem_limit, 24 * 1024 * 1024)
    budget = int(vmem_limit * 0.6)        # planned bytes for x/w/out/acc blocks

    # Weight residency vs. K-tiling.
    w_resident_bufs = 1 if _HAS_BUFFERED else 2
    w_full = K * c_pad * w_item
    resident_cap = (budget // 2 if max_resident_weight_bytes is None
                    else max_resident_weight_bytes)
    if K % _LANE != 0 or w_full * w_resident_bufs <= resident_cap:
        # Fully resident weight (v5e/v6e with 128 MiB VMEM, or small heads).
        # (K % 128 != 0 also lands here: a full-extent block needs no padding.)
        tk, nk = K, 1
        w_vmem = w_full * w_resident_bufs
    else:
        # Stream the weight in ~2 MiB K-blocks (double-buffered) with an
        # accumulator -> fits v7x's 64 MiB VMEM and overlaps DMA with the MXU.
        tgt_lanes = max(1, (2 * 1024 * 1024) // (c_pad * w_item * _LANE))
        tk = _LANE * _largest_divisor_leq(K // _LANE, tgt_lanes)
        nk = K // tk
        w_vmem = 2 * tk * c_pad * w_item

    # Batch tile: biggest tb whose double-buffered x slab (+ out/acc) fits.
    per_row = 2 * tk * x_item + 3 * c_pad * 4      # x (x2) + out (x2) + acc
    tb = max(1, min(B, (budget - w_vmem) // max(per_row, 1)))
    if tb >= B or B <= _SUBLANE:
        tb = B                                     # full dim: always legal
    else:
        tb = max(_SUBLANE, (tb // _SUBLANE) * _SUBLANE)
    if B >= 2 * _SUBLANE:
        # >= 2 batch steps so the "parallel" axis splits across v7x's two TCs.
        tb = min(tb, _round_up(pl.cdiv(B, 2), _SUBLANE))
    nb = pl.cdiv(B, tb)
    # NOTE: if B % tb != 0 the last tile reads out-of-range batch rows; rows
    # are independent and OOB output rows are masked, so results stay correct.

    w_spec = _spec((tk, c_pad), lambda i, k: (k, 0),
                   buffers=1 if nk == 1 else None)
    b_spec = _spec((1, c_pad), lambda i, k: (0, 0), buffers=1)

    cost = pl.CostEstimate(
        flops=2 * B * K * c_pad,
        transcendentals=B * c_pad,
        bytes_accessed=(B * K * x_item + nb * K * c_pad * w_item
                        + B * c_pad * 4 + c_pad * 4),
    )

    out = pl.pallas_call(
        _head_kernel,
        out_shape=jax.ShapeDtypeStruct((B, c_pad), jnp.float32),
        grid=(nb, nk),
        in_specs=[
            pl.BlockSpec((tb, tk), lambda i, k: (i, k)),   # streamed features
            w_spec,                                        # resident or K-streamed
            b_spec,                                        # resident bias
        ],
        out_specs=pl.BlockSpec((tb, c_pad), lambda i, k: (i, 0)),
        scratch_shapes=[pltpu.VMEM((tb, c_pad), jnp.float32)],
        compiler_params=pltpu.CompilerParams(
            dimension_semantics=("parallel", "arbitrary"),
            vmem_limit_bytes=int(vmem_limit),
        ),
        cost_estimate=cost,
    )(x, w_exp, b_pad)

    return out[:, :c_out]                                  # drop lane padding


def _reference(x_nchw, weight, bias):
    """Pure-JAX reference of the classifier head (mirrors PyTorch semantics)."""
    pooled = jnp.mean(x_nchw.astype(jnp.float32), axis=(2, 3))  # AvgPool(1)+Flatten
    logits = pooled @ weight.astype(jnp.float32).T + bias.astype(jnp.float32)
    return jax.nn.sigmoid(logits)


if __name__ == "__main__":
    key = jax.random.PRNGKey(0)
    kx, kw, kb = jax.random.split(key, 3)

    B, C, H, W = 2, 1024, 7, 7     # C=1024 fixed by Linear(in_features=1024, ...)
    c = 17                         # Planet dataset: 17 labels

    # Input: feature map produced by M.features (synthetic, deterministic).
    x = jax.random.normal(kx, (B, C, H, W), dtype=jnp.float32)

    # Deterministic Linear params, PyTorch-default-style uniform bounds.
    bound = 1.0 / jnp.sqrt(jnp.float32(C))
    weight = jax.random.uniform(kw, (c, C), minval=-bound, maxval=bound,
                                dtype=jnp.float32)
    bias = jax.random.uniform(kb, (c,), minval=-bound, maxval=bound,
                              dtype=jnp.float32)

    ref = _reference(x, weight, bias)

    # One-time param prep (hoisted out of the per-call path).
    w32, b32, c_out = prepare_head_params(weight, bias, H, W,
                                          param_dtype=jnp.float32)
    wbf, bbf, _ = prepare_head_params(weight, bias, H, W,
                                      param_dtype=jnp.bfloat16)

    run = jax.jit(planet_densenet_head, static_argnums=(3,))
    run_stream = jax.jit(
        functools.partial(planet_densenet_head, max_resident_weight_bytes=0),
        static_argnums=(3,))

    # f32 path (tolerance allows for MXU matmul precision + reduction reorder).
    out = jax.block_until_ready(run(x, w32, b32, c_out))
    assert out.shape == (B, c)
    assert jnp.allclose(out, ref, atol=2e-3), "f32 mismatch vs reference"

    # Forced K-streaming path (exercises the accumulator / v7x-style tiling).
    out_s = jax.block_until_ready(run_stream(x, w32, b32, c_out))
    assert out_s.shape == (B, c)
    assert jnp.allclose(out_s, ref, atol=2e-3), "streamed-weight mismatch"

    # bf16 feature-map + bf16 expanded-weight path (halves HBM bytes; the MXU
    # still accumulates in f32 inside the kernel).
    out_bf16 = jax.block_until_ready(run(x.astype(jnp.bfloat16), wbf, bbf, c_out))
    assert out_bf16.shape == (B, c)
    assert jnp.allclose(out_bf16, ref, atol=2e-2), "bf16 mismatch vs reference"

    print("KERNEL_OK")
</pallas_src>

<mosaic_0001>
module attributes {stable_mosaic.version = 11 : i64} {
  func.func @_head_kernel(%arg0: i32, %arg1: i32, %arg2: memref<2x3584xf32, #tpu.memory_space<vmem>>, %arg3: memref<3584x128xf32, #tpu.memory_space<vmem>>, %arg4: memref<1x128xf32, #tpu.memory_space<vmem>>, %arg5: memref<2x128xf32, #tpu.memory_space<vmem>>, %arg6: memref<2x128xf32, #tpu.memory_space<vmem>>) attributes {dimension_semantics = [#tpu.dimension_semantics<parallel>, #tpu.dimension_semantics<arbitrary>], iteration_bounds = array<i64: 1, 14>, scalar_prefetch = 0 : i64, scratch_operands = 1 : i64, tpu.core_type = #tpu.core_type<tc>, window_params = [{transform_indices = @transform_0, window_bounds = array<i64: 2, 3584>}, {transform_indices = @transform_1, window_bounds = array<i64: 3584, 128>}, {pipeline_mode = #tpu.pipeline_mode<synchronous>, transform_indices = @transform_2, window_bounds = array<i64: 1, 128>}, {transform_indices = @transform_3, window_bounds = array<i64: 2, 128>}]} {
    %c0_i32 = arith.constant 0 : i32
    %0 = arith.cmpi eq, %arg1, %c0_i32 : i32
    %1 = arith.extui %0 : i1 to i32
    %c0_i32_0 = arith.constant 0 : i32
    %2 = arith.cmpi ne, %1, %c0_i32_0 : i32
    scf.if %2 {
      %cst_9 = arith.constant 0.000000e+00 : f32
      %12 = vector.broadcast %cst_9 : f32 to vector<2x128xf32>
      %c0_10 = arith.constant 0 : index
      %c0_11 = arith.constant 0 : index
      %13 = vector.load %arg6[%c0_10, %c0_11] : memref<2x128xf32, #tpu.memory_space<vmem>>, vector<2x128xf32>
      tpu.vector_store %arg6[%c0_10, %c0_11], %12 {strides = array<i32>} : memref<2x128xf32, #tpu.memory_space<vmem>>, vector<2x128xf32>,
    } else {
    }
    %c0 = arith.constant 0 : index
    %c0_1 = arith.constant 0 : index
    %3 = vector.load %arg6[%c0, %c0_1] : memref<2x128xf32, #tpu.memory_space<vmem>>, vector<2x128xf32>
    %c0_2 = arith.constant 0 : index
    %c0_3 = arith.constant 0 : index
    %4 = vector.load %arg2[%c0_2, %c0_3] : memref<2x3584xf32, #tpu.memory_space<vmem>>, vector<2x3584xf32>
    %c0_4 = arith.constant 0 : index
    %c0_5 = arith.constant 0 : index
    %5 = vector.load %arg3[%c0_4, %c0_5] : memref<3584x128xf32, #tpu.memory_space<vmem>>, vector<3584x128xf32>
    %cst = arith.constant dense<0.000000e+00> : vector<2x128xf32>
    %6 = tpu.matmul %4, %5, %cst {dimension_numbers = #tpu.dot_dimension_numbers<[1], [0], [0], [1], [0, 0, 1, 1], [], []>} : vector<2x3584xf32>, vector<3584x128xf32>, vector<2x128xf32> -> vector<2x128xf32>
    %7 = arith.addf %3, %6 : vector<2x128xf32>
    %c0_6 = arith.constant 0 : index
    %c0_7 = arith.constant 0 : index
    %8 = vector.load %arg6[%c0_6, %c0_7] : memref<2x128xf32, #tpu.memory_space<vmem>>, vector<2x128xf32>
    tpu.vector_store %arg6[%c0_6, %c0_7], %7 {strides = array<i32>} : memref<2x128xf32, #tpu.memory_space<vmem>>, vector<2x128xf32>,
    %c13_i32 = arith.constant 13 : i32
    %9 = arith.cmpi eq, %arg1, %c13_i32 : i32
    %10 = arith.extui %9 : i1 to i32
    %c0_i32_8 = arith.constant 0 : i32
    %11 = arith.cmpi ne, %10, %c0_i32_8 : i32
    scf.if %11 {
      %c0_9 = arith.constant 0 : index
      %c0_10 = arith.constant 0 : index
      %12 = vector.load %arg6[%c0_9, %c0_10] : memref<2x128xf32, #tpu.memory_space<vmem>>, vector<2x128xf32>
      %c0_11 = arith.constant 0 : index
      %c0_12 = arith.constant 0 : index
      %13 = vector.load %arg4[%c0_11, %c0_12] : memref<1x128xf32, #tpu.memory_space<vmem>>, vector<1x128xf32>
      %14 = vector.broadcast %13 : vector<1x128xf32> to vector<2x128xf32>
      %15 = arith.addf %12, %14 : vector<2x128xf32>
      %cst_13 = arith.constant 0.000000e+00 : f32
      %16 = vector.broadcast %cst_13 : f32 to vector<2x128xf32>
      %17 = arith.subf %16, %15 : vector<2x128xf32>
      %18 = math.exp %17 : vector<2x128xf32>
      %cst_14 = arith.constant 1.000000e+00 : f32
      %19 = vector.broadcast %cst_14 : f32 to vector<2x128xf32>
      %20 = arith.addf %19, %18 : vector<2x128xf32>
      %cst_15 = arith.constant 1.000000e+00 : f32
      %21 = vector.broadcast %cst_15 : f32 to vector<2x128xf32>
      %22 = arith.divf %21, %20 : vector<2x128xf32>
      %c0_16 = arith.constant 0 : index
      %c0_17 = arith.constant 0 : index
      %23 = vector.load %arg5[%c0_16, %c0_17] : memref<2x128xf32, #tpu.memory_space<vmem>>, vector<2x128xf32>
      tpu.vector_store %arg5[%c0_16, %c0_17], %22 {strides = array<i32>} : memref<2x128xf32, #tpu.memory_space<vmem>>, vector<2x128xf32>,
    } else {
    }
    return
  }
  func.func @transform_0(%arg0: i32, %arg1: i32) -> (i32, i32) {
    %c0_i32 = arith.constant 0 : i32
    return %arg0, %arg1 : i32, i32
  }
  func.func @transform_1(%arg0: i32, %arg1: i32) -> (i32, i32) {
    %c0_i32 = arith.constant 0 : i32
    %c0_i32_0 = arith.constant 0 : i32
    return %arg1, %c0_i32 : i32, i32
  }
  func.func @transform_2(%arg0: i32, %arg1: i32) -> (i32, i32) {
    %c0_i32 = arith.constant 0 : i32
    %c0_i32_0 = arith.constant 0 : i32
    %c0_i32_1 = arith.constant 0 : i32
    return %c0_i32, %c0_i32_0 : i32, i32
  }
  func.func @transform_3(%arg0: i32, %arg1: i32) -> (i32, i32) {
    %c0_i32 = arith.constant 0 : i32
    %c0_i32_0 = arith.constant 0 : i32
    return %arg0, %c0_i32 : i32, i32
  }
}

</mosaic_0001>

<llo_original>
// kernel: planet_densenet_head.1
$region0: #{planet_densenet_head.1}
  #allocation0 [shape = 'u32[]', space=smem, size = 0x4, offset = 0x4, fixed_abs, tag = 'smem constant byte address 0x4 - core index']
  #allocation1 [shape = 'u32[144,128]{1,0:T(1,128)}', space=vmem, size = 0x12000, scoped, tag = 'internal scratch']
  #allocation2 [shape = 'f32[2,128]{1,0:T(2,128)}', space=vmem, size = 0x400, scoped, tag = 'scratch operand']
  %s0 = inlined_call_operand.vmem [shape: f32[2,50176], index: 0, kind: input, shape index: {}]
  %s1 = inlined_call_operand.hbm [shape: f32[50176,128], index: 1, kind: input, shape index: {}]
  %s2 = inlined_call_operand.hbm [shape: f32[1,128], index: 2, kind: input, shape index: {}]
  %s3 = inlined_call_operand.hbm [shape: f32[2,128], index: 3, kind: output, shape index: {}]
  %s4 = sld [smem:[#allocation0]]
  $region61: #{planet_densenet_head.1} parent=0
    _
  %s6 = ssub.s32 1, %s4
  %s7 = scalar_select 0, %s6, %s4
  $region1: #{planet_densenet_head.1} parent=0
    #allocation3 [shape = 'u8[3670016]{0}', space=vmem, size = 0x380000, scoped, tag = 'input window, operand 1']
    #allocation4 [shape = 's32[2]{0}', space=sflag, size = 0x8, scoped, tag = 'scoped memory for planet_densenet_head.1']
    #allocation5 [shape = 's32[2]{0}', space=sflag, size = 0x8, scoped, tag = 'scoped memory for planet_densenet_head.1']
    #allocation6 [shape = 'u8[512]{0}', space=vmem, size = 0x400, scoped, tag = 'input window, operand 2, single buffered']
    #allocation7 [shape = 's32[1]{0}', space=sflag, size = 0x4, scoped, tag = 'scoped memory for planet_densenet_head.1']
    #allocation8 [shape = 'u8[1024]{0}', space=vmem, size = 0x400, scoped, tag = 'output window, operand 0, single buffered']
    %8 = vsyncpa [#allocation4], 0
    %s9 = scalar_lea.sflag [#allocation4], 1
    %10 = vsyncpa %s9, 0
    %11 = vsyncpa [#allocation7], 0
    %12 = vsyncpa [#allocation5], 0
    loop: start=0, step=1, limit=16
    $region2: #{planet_densenet_head.1} parent=1 // loop_pre_header
      _
    $region3: #{planet_densenet_head.1} parent=1 // loop_header
      %s14 = sphi 0, %s18
      %p15 = scmp.ge.s32.totalorder %s14, 16
      %s21 = sphi 0, %s33
      %s22 = sphi 0, %s29
      %s23 = sphi 0, %s21
      %s24 = sphi 0, %s22
      %s25 = sphi 0, %s23
      %s26 = sphi 0, %s24
      %s38 = sphi 0, %s40
      %s41 = sphi 0, %s38
      %s42 = sphi 0, %s41
      %s58 = sphi 0, %s42
      %s64 = sphi 0, %s66
      %s67 = sphi 0, %s64
      %s68 = sphi 0, %s67
      %s84 = sphi 0, %s68
      %s88 = sphi 0, %s88
      %s90 = sphi 0, %s88
      %s91 = sphi 0, %s90
      %s105 = sphi 0, %s91
      %s111 = sphi 0, %s113
      %s114 = sphi 0, %s111
      %s115 = sphi 0, %s114
      %s131 = sphi 0, %s115
    $region4: #{planet_densenet_head.1} parent=1 // loop_header_branch
      %17 = sbr.rel (%p15) target = $region8
    $region5: #{planet_densenet_head.1} parent=1 // loop_body
      %s19 = ssub.s32 %s14, 1
      %s20 = ssub.s32 %s14, 2
      %s27 = sadd.s32 1, %s22
      %p28 = scmp.ge.s32.totalorder %s27, 14
      %s29 = scalar_select %p28, 0, %s27
      %s30 = sadd.s32 1, %s21
      %s31 = scalar_select %p28, %s30, %s21
      %p32 = scmp.ge.s32.totalorder %s31, 1
      %s33 = scalar_select %p32, 0, %s31
      %s34 = ssub.s32 %s21, %s33
      %s35 = ssub.s32 %s22, %s29
      %s36 = sor.u32 %s34, %s35
      %p37 = scmp.eq.s32.totalorder %s36, 0
      %s39 = sadd.s32 %s38, 1
      %s40 = scalar_select %p37, %s38, %s39
      %p43 = pneg %p37
      %p44 = scmp.eq.s32.totalorder %s14, 13
      %p45 = por %p43, %p44
      %p46 = scmp.ne.s32.totalorder %s38, %s41
      %p47 = scmp.eq.s32.totalorder %s14, 0
      %p48 = por %p46, %p47
      %p49 = scmp.ne.s32.totalorder %s38, %s41
      %p50 = scmp.eq.s32.totalorder %s19, 13
      %p51 = por %p49, %p50
      %p52 = scmp.ne.s32.totalorder %s41, %s42
      %p53 = scmp.eq.s32.totalorder %s19, 0
      %p54 = por %p52, %p53
      %p55 = scmp.ne.s32.totalorder %s41, %s42
      %p56 = scmp.eq.s32.totalorder %s20, 13
      %p57 = por %p55, %p56
      %p59 = scmp.ne.s32.totalorder %s42, %s58
      %p60 = scmp.eq.s32.totalorder %s20, 0
      %p61 = por %p59, %p60
      %s62 = ssub.s32 %s22, %s29
      %p63 = scmp.eq.s32.totalorder %s62, 0
      %s65 = sadd.s32 %s64, 1
      %s66 = scalar_select %p63, %s64, %s65
      %p69 = pneg %p63
      %p70 = scmp.eq.s32.totalorder %s14, 13
      %p71 = por %p69, %p70
      %p72 = scmp.ne.s32.totalorder %s64, %s67
      %p73 = scmp.eq.s32.totalorder %s14, 0
      %p74 = por %p72, %p73
      %p75 = scmp.ne.s32.totalorder %s64, %s67
      %p76 = scmp.eq.s32.totalorder %s19, 13
      %p77 = por %p75, %p76
      %p78 = scmp.ne.s32.totalorder %s67, %s68
      %p79 = scmp.eq.s32.totalorder %s19, 0
      %p80 = por %p78, %p79
      %p81 = scmp.ne.s32.totalorder %s67, %s68
      %p82 = scmp.eq.s32.totalorder %s20, 13
      %p83 = por %p81, %p82
      %p85 = scmp.ne.s32.totalorder %s68, %s84
      %p86 = scmp.eq.s32.totalorder %s20, 0
      %p87 = por %p85, %p86
      %s89 = sadd.s32 %s88, 1
      %p92 = scmp.eq.s32.totalorder %s14, 13
      %p93 = scmp.ne.s32.totalorder %s88, %s90
      %p94 = scmp.eq.s32.totalorder %s14, 0
      %p95 = por %p93, %p94
      %p96 = scmp.ne.s32.totalorder %s88, %s90
      %p97 = scmp.eq.s32.totalorder %s19, 13
      %p98 = por %p96, %p97
      %p99 = scmp.ne.s32.totalorder %s90, %s91
      %p100 = scmp.eq.s32.totalorder %s19, 0
      %p101 = por %p99, %p100
      %p102 = scmp.ne.s32.totalorder %s90, %s91
      %p103 = scmp.eq.s32.totalorder %s20, 13
      %p104 = por %p102, %p103
      %p106 = scmp.ne.s32.totalorder %s91, %s105
      %p107 = scmp.eq.s32.totalorder %s20, 0
      %p108 = por %p106, %p107
      %s109 = ssub.s32 %s21, %s33
      %p110 = scmp.eq.s32.totalorder %s109, 0
      %s112 = sadd.s32 %s111, 1
      %s113 = scalar_select %p110, %s111, %s112
      %p116 = pneg %p110
      %p117 = scmp.eq.s32.totalorder %s14, 13
      %p118 = por %p116, %p117
      %p119 = scmp.ne.s32.totalorder %s111, %s114
      %p120 = scmp.eq.s32.totalorder %s14, 0
      %p121 = por %p119, %p120
      %p122 = scmp.ne.s32.totalorder %s111, %s114
      %p123 = scmp.eq.s32.totalorder %s19, 13
      %p124 = por %p122, %p123
      %p125 = scmp.ne.s32.totalorder %s114, %s115
      %p126 = scmp.eq.s32.totalorder %s19, 0
      %p127 = por %p125, %p126
      %p128 = scmp.ne.s32.totalorder %s114, %s115
      %p129 = scmp.eq.s32.totalorder %s20, 13
      %p130 = por %p128, %p129
      %p132 = scmp.ne.s32.totalorder %s115, %s131
      %p133 = scmp.eq.s32.totalorder %s20, 0
      %p134 = por %p132, %p133
      %p135 = scmp.le.s32.totalorder 1, %s14
      %p136 = scmp.lt.s32.totalorder %s14, 15
      %p137 = pnand %p135, %p136
      %p138 = pneg %p137
      // Predicated region
      $region9: #{planet_densenet_head.1} parent=5 // pred_check
        _
      $region10: #{planet_densenet_head.1} parent=5 // pred_check_branch
        %140 = sbr.rel (%p137) target = $region12
      $region11: #{planet_densenet_head.1} parent=5 // pred_region
        %s141 = ssub.s32 %s14, 1
        // Predicated region
        $region13: #{planet_densenet_head.1} parent=11 // pred_check
          %p142 = pneg %p101
        $region14: #{planet_densenet_head.1} parent=11 // pred_check_branch
          %144 = sbr.rel (%p142) target = $region16
        $region15: #{planet_densenet_head.1} parent=11 // pred_region
          %s146 = ssub.s32 16, 16
          %147 = vsyncadd [#allocation7], %s146
          %s149 = sshll.u32 [#allocation6], 4
          %s150 = int_to_ptr.vmem [resolvable:$true] %s149
          %152 = dma.hbm_to_vmem [thread:$0]  %s2, 16, %s150, [#allocation7]
        $region16: #{planet_densenet_head.1} parent=11 // pred_fallthru
          _
      $region12: #{planet_densenet_head.1} parent=5 // pred_fallthru
        _
      %p153 = scmp.lt.s32.totalorder %s14, 14
      // Predicated region
      $region17: #{planet_densenet_head.1} parent=5 // pred_check
        %p154 = pneg %p153
      $region18: #{planet_densenet_head.1} parent=5 // pred_check_branch
        %156 = sbr.rel (%p154) target = $region20
      $region19: #{planet_densenet_head.1} parent=5 // pred_region
        // Predicated region
        $region21: #{planet_densenet_head.1} parent=19 // pred_check
          %p157 = pneg %p48
        $region22: #{planet_densenet_head.1} parent=19 // pred_check_branch
          %159 = sbr.rel (%p157) target = $region24
        $region23: #{planet_densenet_head.1} parent=19 // pred_region
          %s160 = smul.u32 28, %s22
          %p161 = scmp.lt.s32.totalorder %s21, 0
          %s162 = scalar_select %p161, %s21, 0
          %p163 = scmp.lt.s32.totalorder %s160, 391
          %s164 = scalar_select %p163, %s160, 391
          %s165 = smul.addr %s162, 392
          %s166 = sadd.s32 %s164, %s165
          %s167 = smul.addr %s166, 2
          %s168 = scalar_lea.vmem %s0, %s167
          %s169 = smul.u32 28, %s22
        $region24: #{planet_densenet_head.1} parent=19 // pred_fallthru
          _
        // Predicated region
        $region25: #{planet_densenet_head.1} parent=19 // pred_check
          %p170 = pneg %p74
        $region26: #{planet_densenet_head.1} parent=19 // pred_check_branch
          %172 = sbr.rel (%p170) target = $region28
        $region27: #{planet_densenet_head.1} parent=19 // pred_region
          %s173 = sand.u32 %s64, 1
          %s174 = scalar_lea.sflag [#allocation4], %s173
          %s175 = sand.u32 %s64, 1
          %s176 = smul.addr %s175, 3584
          %s177 = scalar_lea.vmem [#allocation3], %s176
          %s178 = smul.u32 448, %s22
          %s180 = ssub.s32 57344, 57344
          %181 = vsyncadd %s174, %s180
          %s182 = smul.addr %s178, 128
          %s183 = scalar_lea.hbm %s1, %s182
          %s184 = sshll.u32 %s177, 4
          %s185 = int_to_ptr.vmem [resolvable:$true] %s184
          %190 = dma.hbm_to_vmem [thread:$0]  %s183, 57344, %s185, %s174, 128, 128, 8
        $region28: #{planet_densenet_head.1} parent=19 // pred_fallthru
          _
      $region20: #{planet_densenet_head.1} parent=5 // pred_fallthru
        _
      %p191 = scmp.le.s32.totalorder 1, %s14
      %p192 = scmp.lt.s32.totalorder %s14, 15
      %p193 = pnand %p191, %p192
      %p194 = pneg %p193
      // Predicated region
      $region29: #{planet_densenet_head.1} parent=5 // pred_check
        _
      $region30: #{planet_densenet_head.1} parent=5 // pred_check_branch
        %196 = sbr.rel (%p193) target = $region32
      $region31: #{planet_densenet_head.1} parent=5 // pred_region
        %s197 = ssub.s32 %s14, 1
        %s198 = sand.u32 %s67, 1
        %s199 = scalar_lea.sflag [#allocation4], %s198
        %s200 = sand.u32 %s67, 1
        %s201 = smul.addr %s200, 3584
        %s202 = scalar_lea.vmem [#allocation3], %s201
        // Predicated region
        $region33: #{planet_densenet_head.1} parent=31 // pred_check
          %p203 = pneg %p80
        $region34: #{planet_densenet_head.1} parent=31 // pred_check_branch
          %205 = sbr.rel (%p203) target = $region36
        $region35: #{planet_densenet_head.1} parent=31 // pred_region
          %206 = dma.done %s199, 57344
        $region36: #{planet_densenet_head.1} parent=31 // pred_fallthru
          _
        // Predicated region
        $region37: #{planet_densenet_head.1} parent=31 // pred_check
          %p207 = pneg %p101
        $region38: #{planet_densenet_head.1} parent=31 // pred_check_branch
          %209 = sbr.rel (%p207) target = $region40
        $region39: #{planet_densenet_head.1} parent=31 // pred_region
          %210 = dma.done [#allocation7], 16
        $region40: #{planet_densenet_head.1} parent=31 // pred_fallthru
          _
        %s211 = smul.u32 28, %s24
        %p212 = scmp.lt.s32.totalorder %s23, 0
        %s213 = scalar_select %p212, %s23, 0
        %p214 = scmp.lt.s32.totalorder %s211, 391
        %s215 = scalar_select %p214, %s211, 391
        %s216 = smul.addr %s213, 392
        %s217 = sadd.s32 %s215, %s216
        %s218 = smul.addr %s217, 2
        %s219 = scalar_lea.vmem %s0, %s218
        %p220 = pneg %p54
        %p221 = pneg %p51
        %s222 = sand.u32 %s67, 1
        %s223 = scalar_lea.sflag [#allocation4], %s222
        %s224 = sand.u32 %s67, 1
        %s225 = smul.addr %s224, 3584
        %s226 = scalar_lea.vmem [#allocation3], %s225
        %p227 = pneg %p80
        %p228 = pneg %p77
        %p229 = pneg %p101
        %p230 = pneg %p98
        %p231 = pneg %p127
        %p232 = pneg %p124
        %s233 = smul.u32 28, %s24
        %p234 = scmp.lt.s32.totalorder %s23, 0
        %s235 = scalar_select %p234, %s23, 0
        %p236 = scmp.lt.s32.totalorder %s233, 391
        %s237 = scalar_select %p236, %s233, 391
        %s238 = smul.addr %s235, 392
        %s239 = sadd.s32 %s237, %s238
        %s240 = smul.addr %s239, 2
        %s241 = scalar_lea.vmem %s0, %s240
        %s242 = smul.u32 28, %s24
        %s243 = smul.u32 448, %s24
        %p244 = scmp.eq.s32.totalorder %s24, 0
        // Predicated region
        $region41: #{planet_densenet_head.1} parent=31 // pred_check
          %p245 = pneg %p244
        $region42: #{planet_densenet_head.1} parent=31 // pred_check_branch
          %247 = sbr.rel (%p245) target = $region44
        $region43: #{planet_densenet_head.1} parent=31 // pred_region
          %248 = vst [vmem:[#allocation2] sm:$0x3] 0.0
        $region44: #{planet_densenet_head.1} parent=31 // pred_fallthru
          _
        %v249 = vld [vmem:[#allocation2] sm:$0x3]
        %v250 = vld [vmem:[%s241] sm:$0xff]
        %v251 = vld [vmem:[%s241 + $0x8] sm:$0xff]
        %v252 = vld [vmem:[%s241 + $0x10] sm:$0xff]
        %v253 = vld [vmem:[%s241 + $0x18] sm:$0xff]
        %v254 = vld [vmem:[%s241 + $0x20] sm:$0xff]
        %v255 = vld [vmem:[%s241 + $0x28] sm:$0xff]
        %v256 = vld [vmem:[%s241 + $0x30] sm:$0xff]
        %v257 = vld [vmem:[%s202] sm:$0xff]
        %v258 = vld [vmem:[%s202 + $0x8] sm:$0xff]
        %v259 = vld [vmem:[%s202 + $0x10] sm:$0xff]
        %v260 = vld [vmem:[%s202 + $0x18] sm:$0xff]
        %v261 = vld [vmem:[%s202 + $0x20] sm:$0xff]
        %v262 = vld [vmem:[%s202 + $0x28] sm:$0xff]
        %v263 = vld [vmem:[%s202 + $0x30] sm:$0xff]
        %v264 = vld [vmem:[%s202 + $0x38] sm:$0xff]
        %v265 = vld [vmem:[%s202 + $0x40] sm:$0xff]
        %v266 = vld [vmem:[%s202 + $0x48] sm:$0xff]
        %v267 = vld [vmem:[%s202 + $0x50] sm:$0xff]
        %v268 = vld [vmem:[%s202 + $0x58] sm:$0xff]
        %v269 = vld [vmem:[%s202 + $0x60] sm:$0xff]
        %v270 = vld [vmem:[%s202 + $0x68] sm:$0xff]
        %v271 = vld [vmem:[%s202 + $0x70] sm:$0xff]
        %v272 = vld [vmem:[%s202 + $0x78] sm:$0xff]
        %v273 = vld [vmem:[%s202 + $0x80] sm:$0xff]
        %v274 = vld [vmem:[%s202 + $0x88] sm:$0xff]
        %v275 = vld [vmem:[%s202 + $0x90] sm:$0xff]
        %v276 = vld [vmem:[%s202 + $0x98] sm:$0xff]
        %v277 = vld [vmem:[%s202 + $0xa0] sm:$0xff]
        %v278 = vld [vmem:[%s202 + $0xa8] sm:$0xff]
        %v279 = vld [vmem:[%s202 + $0xb0] sm:$0xff]
        %v280 = vld [vmem:[%s202 + $0xb8] sm:$0xff]
        %v281 = vld [vmem:[%s202 + $0xc0] sm:$0xff]
        %v282 = vld [vmem:[%s202 + $0xc8] sm:$0xff]
        %v283 = vld [vmem:[%s202 + $0xd0] sm:$0xff]
        %v284 = vld [vmem:[%s202 + $0xd8] sm:$0xff]
        %v285 = vld [vmem:[%s202 + $0xe0] sm:$0xff]
        %v286 = vld [vmem:[%s202 + $0xe8] sm:$0xff]
        %v287 = vld [vmem:[%s202 + $0xf0] sm:$0xff]
        %v288 = vld [vmem:[%s202 + $0xf8] sm:$0xff]
        %v289 = vld [vmem:[%s202 + $0x100] sm:$0xff]
        %v290 = vld [vmem:[%s202 + $0x108] sm:$0xff]
        %v291 = vld [vmem:[%s202 + $0x110] sm:$0xff]
        %v292 = vld [vmem:[%s202 + $0x118] sm:$0xff]
        %v293 = vld [vmem:[%s202 + $0x120] sm:$0xff]
        %v294 = vld [vmem:[%s202 + $0x128] sm:$0xff]
        %v295 = vld [vmem:[%s202 + $0x130] sm:$0xff]
        %v296 = vld [vmem:[%s202 + $0x138] sm:$0xff]
        %v297 = vld [vmem:[%s202 + $0x140] sm:$0xff]
        %v298 = vld [vmem:[%s202 + $0x148] sm:$0xff]
        %v299 = vld [vmem:[%s202 + $0x150] sm:$0xff]
        %v300 = vld [vmem:[%s202 + $0x158] sm:$0xff]
        %v301 = vld [vmem:[%s202 + $0x160] sm:$0xff]
        %v302 = vld [vmem:[%s202 + $0x168] sm:$0xff]
        %v303 = vld [vmem:[%s202 + $0x170] sm:$0xff]
        %v304 = vld [vmem:[%s202 + $0x178] sm:$0xff]
        %v305 = vld [vmem:[%s202 + $0x180] sm:$0xff]
        %v306 = vld [vmem:[%s202 + $0x188] sm:$0xff]
        %v307 = vld [vmem:[%s202 + $0x190] sm:$0xff]
        %v308 = vld [vmem:[%s202 + $0x198] sm:$0xff]
        %v309 = vld [vmem:[%s202 + $0x1a0] sm:$0xff]
        %v310 = vld [vmem:[%s202 + $0x1a8] sm:$0xff]
        %v311 = vld [vmem:[%s202 + $0x1b0] sm:$0xff]
        %v312 = vld [vmem:[%s202 + $0x1b8] sm:$0xff]
        %v313 = vld [vmem:[%s202 + $0x1c0] sm:$0xff]
        %v314 = vld [vmem:[%s202 + $0x1c8] sm:$0xff]
        %v315 = vld [vmem:[%s202 + $0x1d0] sm:$0xff]
        %v316 = vld [vmem:[%s202 + $0x1d8] sm:$0xff]
        %v317 = vld [vmem:[%s202 + $0x1e0] sm:$0xff]
        %v318 = vld [vmem:[%s202 + $0x1e8] sm:$0xff]
        %v319 = vld [vmem:[%s202 + $0x1f0] sm:$0xff]
        %v320 = vld [vmem:[%s202 + $0x1f8] sm:$0xff]
        %v321 = vld [vmem:[%s202 + $0x200] sm:$0xff]
        %v322 = vld [vmem:[%s202 + $0x208] sm:$0xff]
        %v323 = vld [vmem:[%s202 + $0x210] sm:$0xff]
        %v324 = vld [vmem:[%s202 + $0x218] sm:$0xff]
        %v325 = vld [vmem:[%s202 + $0x220] sm:$0xff]
        %v326 = vld [vmem:[%s202 + $0x228] sm:$0xff]
        %v327 = vld [vmem:[%s202 + $0x230] sm:$0xff]
        %v328 = vld [vmem:[%s202 + $0x238] sm:$0xff]
        %v329 = vld [vmem:[%s202 + $0x240] sm:$0xff]
        %v330 = vld [vmem:[%s202 + $0x248] sm:$0xff]
        %v331 = vld [vmem:[%s202 + $0x250] sm:$0xff]
        %v332 = vld [vmem:[%s202 + $0x258] sm:$0xff]
        %v333 = vld [vmem:[%s202 + $0x260] sm:$0xff]
        %v334 = vld [vmem:[%s202 + $0x268] sm:$0xff]
        %v335 = vld [vmem:[%s202 + $0x270] sm:$0xff]
        %v336 = vld [vmem:[%s202 + $0x278] sm:$0xff]
        %v337 = vld [vmem:[%s202 + $0x280] sm:$0xff]
        %v338 = vld [vmem:[%s202 + $0x288] sm:$0xff]
        %v339 = vld [vmem:[%s202 + $0x290] sm:$0xff]
        %v340 = vld [vmem:[%s202 + $0x298] sm:$0xff]
        %v341 = vld [vmem:[%s202 + $0x2a0] sm:$0xff]
        %v342 = vld [vmem:[%s202 + $0x2a8] sm:$0xff]
        %v343 = vld [vmem:[%s202 + $0x2b0] sm:$0xff]
        %v344 = vld [vmem:[%s202 + $0x2b8] sm:$0xff]
        %v345 = vld [vmem:[%s202 + $0x2c0] sm:$0xff]
        %v346 = vld [vmem:[%s202 + $0x2c8] sm:$0xff]
        %v347 = vld [vmem:[%s202 + $0x2d0] sm:$0xff]
        %v348 = vld [vmem:[%s202 + $0x2d8] sm:$0xff]
        %v349 = vld [vmem:[%s202 + $0x2e0] sm:$0xff]
        %v350 = vld [vmem:[%s202 + $0x2e8] sm:$0xff]
        %v351 = vld [vmem:[%s202 + $0x2f0] sm:$0xff]
        %v352 = vld [vmem:[%s202 + $0x2f8] sm:$0xff]
        %v353 = vld [vmem:[%s202 + $0x300] sm:$0xff]
        %v354 = vld [vmem:[%s202 + $0x308] sm:$0xff]
        %v355 = vld [vmem:[%s202 + $0x310] sm:$0xff]
        %v356 = vld [vmem:[%s202 + $0x318] sm:$0xff]
        %v357 = vld [vmem:[%s202 + $0x320] sm:$0xff]
        %v358 = vld [vmem:[%s202 + $0x328] sm:$0xff]
        %v359 = vld [vmem:[%s202 + $0x330] sm:$0xff]
        %v360 = vld [vmem:[%s202 + $0x338] sm:$0xff]
        %v361 = vld [vmem:[%s202 + $0x340] sm:$0xff]
        %v362 = vld [vmem:[%s202 + $0x348] sm:$0xff]
        %v363 = vld [vmem:[%s202 + $0x350] sm:$0xff]
        %v364 = vld [vmem:[%s202 + $0x358] sm:$0xff]
        %v365 = vld [vmem:[%s202 + $0x360] sm:$0xff]
        %v366 = vld [vmem:[%s202 + $0x368] sm:$0xff]
        %v367 = vld [vmem:[%s202 + $0x370] sm:$0xff]
        %v368 = vld [vmem:[%s202 + $0x378] sm:$0xff]
        %v369 = vld [vmem:[%s202 + $0x380] sm:$0xff]
        %v370 = vld [vmem:[%s202 + $0x388] sm:$0xff]
        %v371 = vld [vmem:[%s202 + $0x390] sm:$0xff]
        %v372 = vld [vmem:[%s202 + $0x398] sm:$0xff]
        %v373 = vld [vmem:[%s202 + $0x3a0] sm:$0xff]
        %v374 = vld [vmem:[%s202 + $0x3a8] sm:$0xff]
        %v375 = vld [vmem:[%s202 + $0x3b0] sm:$0xff]
        %v376 = vld [vmem:[%s202 + $0x3b8] sm:$0xff]
        %v377 = vld [vmem:[%s202 + $0x3c0] sm:$0xff]
        %v378 = vld [vmem:[%s202 + $0x3c8] sm:$0xff]
        %v379 = vld [vmem:[%s202 + $0x3d0] sm:$0xff]
        %v380 = vld [vmem:[%s202 + $0x3d8] sm:$0xff]
        %v381 = vld [vmem:[%s202 + $0x3e0] sm:$0xff]
        %v382 = vld [vmem:[%s202 + $0x3e8] sm:$0xff]
        %v383 = vld [vmem:[%s202 + $0x3f0] sm:$0xff]
        %v384 = vld [vmem:[%s202 + $0x3f8] sm:$0xff]
        %v385 = vld [vmem:[%s202 + $0x400] sm:$0xff]
        %v386 = vld [vmem:[%s202 + $0x408] sm:$0xff]
        %v387 = vld [vmem:[%s202 + $0x410] sm:$0xff]
        %v388 = vld [vmem:[%s202 + $0x418] sm:$0xff]
        %v389 = vld [vmem:[%s202 + $0x420] sm:$0xff]
        %v390 = vld [vmem:[%s202 + $0x428] sm:$0xff]
        %v391 = vld [vmem:[%s202 + $0x430] sm:$0xff]
        %v392 = vld [vmem:[%s202 + $0x438] sm:$0xff]
        %v393 = vld [vmem:[%s202 + $0x440] sm:$0xff]
        %v394 = vld [vmem:[%s202 + $0x448] sm:$0xff]
        %v395 = vld [vmem:[%s202 + $0x450] sm:$0xff]
        %v396 = vld [vmem:[%s202 + $0x458] sm:$0xff]
        %v397 = vld [vmem:[%s202 + $0x460] sm:$0xff]
        %v398 = vld [vmem:[%s202 + $0x468] sm:$0xff]
        %v399 = vld [vmem:[%s202 + $0x470] sm:$0xff]
        %v400 = vld [vmem:[%s202 + $0x478] sm:$0xff]
        %v401 = vld [vmem:[%s202 + $0x480] sm:$0xff]
        %v402 = vld [vmem:[%s202 + $0x488] sm:$0xff]
        %v403 = vld [vmem:[%s202 + $0x490] sm:$0xff]
        %v404 = vld [vmem:[%s202 + $0x498] sm:$0xff]
        %v405 = vld [vmem:[%s202 + $0x4a0] sm:$0xff]
        %v406 = vld [vmem:[%s202 + $0x4a8] sm:$0xff]
        %v407 = vld [vmem:[%s202 + $0x4b0] sm:$0xff]
        %v408 = vld [vmem:[%s202 + $0x4b8] sm:$0xff]
        %v409 = vld [vmem:[%s202 + $0x4c0] sm:$0xff]
        %v410 = vld [vmem:[%s202 + $0x4c8] sm:$0xff]
        %v411 = vld [vmem:[%s202 + $0x4d0] sm:$0xff]
        %v412 = vld [vmem:[%s202 + $0x4d8] sm:$0xff]
        %v413 = vld [vmem:[%s202 + $0x4e0] sm:$0xff]
        %v414 = vld [vmem:[%s202 + $0x4e8] sm:$0xff]
        %v415 = vld [vmem:[%s202 + $0x4f0] sm:$0xff]
        %v416 = vld [vmem:[%s202 + $0x4f8] sm:$0xff]
        %v417 = vld [vmem:[%s202 + $0x500] sm:$0xff]
        %v418 = vld [vmem:[%s202 + $0x508] sm:$0xff]
        %v419 = vld [vmem:[%s202 + $0x510] sm:$0xff]
        %v420 = vld [vmem:[%s202 + $0x518] sm:$0xff]
        %v421 = vld [vmem:[%s202 + $0x520] sm:$0xff]
        %v422 = vld [vmem:[%s202 + $0x528] sm:$0xff]
        %v423 = vld [vmem:[%s202 + $0x530] sm:$0xff]
        %v424 = vld [vmem:[%s202 + $0x538] sm:$0xff]
        %v425 = vld [vmem:[%s202 + $0x540] sm:$0xff]
        %v426 = vld [vmem:[%s202 + $0x548] sm:$0xff]
        %v427 = vld [vmem:[%s202 + $0x550] sm:$0xff]
        %v428 = vld [vmem:[%s202 + $0x558] sm:$0xff]
        %v429 = vld [vmem:[%s202 + $0x560] sm:$0xff]
        %v430 = vld [vmem:[%s202 + $0x568] sm:$0xff]
        %v431 = vld [vmem:[%s202 + $0x570] sm:$0xff]
        %v432 = vld [vmem:[%s202 + $0x578] sm:$0xff]
        %v433 = vld [vmem:[%s202 + $0x580] sm:$0xff]
        %v434 = vld [vmem:[%s202 + $0x588] sm:$0xff]
        %v435 = vld [vmem:[%s202 + $0x590] sm:$0xff]
        %v436 = vld [vmem:[%s202 + $0x598] sm:$0xff]
        %v437 = vld [vmem:[%s202 + $0x5a0] sm:$0xff]
        %v438 = vld [vmem:[%s202 + $0x5a8] sm:$0xff]
        %v439 = vld [vmem:[%s202 + $0x5b0] sm:$0xff]
        %v440 = vld [vmem:[%s202 + $0x5b8] sm:$0xff]
        %v441 = vld [vmem:[%s202 + $0x5c0] sm:$0xff]
        %v442 = vld [vmem:[%s202 + $0x5c8] sm:$0xff]
        %v443 = vld [vmem:[%s202 + $0x5d0] sm:$0xff]
        %v444 = vld [vmem:[%s202 + $0x5d8] sm:$0xff]
        %v445 = vld [vmem:[%s202 + $0x5e0] sm:$0xff]
        %v446 = vld [vmem:[%s202 + $0x5e8] sm:$0xff]
        %v447 = vld [vmem:[%s202 + $0x5f0] sm:$0xff]
        %v448 = vld [vmem:[%s202 + $0x5f8] sm:$0xff]
        %v449 = vld [vmem:[%s202 + $0x600] sm:$0xff]
        %v450 = vld [vmem:[%s202 + $0x608] sm:$0xff]
        %v451 = vld [vmem:[%s202 + $0x610] sm:$0xff]
        %v452 = vld [vmem:[%s202 + $0x618] sm:$0xff]
        %v453 = vld [vmem:[%s202 + $0x620] sm:$0xff]
        %v454 = vld [vmem:[%s202 + $0x628] sm:$0xff]
        %v455 = vld [vmem:[%s202 + $0x630] sm:$0xff]
        %v456 = vld [vmem:[%s202 + $0x638] sm:$0xff]
        %v457 = vld [vmem:[%s202 + $0x640] sm:$0xff]
        %v458 = vld [vmem:[%s202 + $0x648] sm:$0xff]
        %v459 = vld [vmem:[%s202 + $0x650] sm:$0xff]
        %v460 = vld [vmem:[%s202 + $0x658] sm:$0xff]
        %v461 = vld [vmem:[%s202 + $0x660] sm:$0xff]
        %v462 = vld [vmem:[%s202 + $0x668] sm:$0xff]
        %v463 = vld [vmem:[%s202 + $0x670] sm:$0xff]
        %v464 = vld [vmem:[%s202 + $0x678] sm:$0xff]
        %v465 = vld [vmem:[%s202 + $0x680] sm:$0xff]
        %v466 = vld [vmem:[%s202 + $0x688] sm:$0xff]
        %v467 = vld [vmem:[%s202 + $0x690] sm:$0xff]
        %v468 = vld [vmem:[%s202 + $0x698] sm:$0xff]
        %v469 = vld [vmem:[%s202 + $0x6a0] sm:$0xff]
        %v470 = vld [vmem:[%s202 + $0x6a8] sm:$0xff]
        %v471 = vld [vmem:[%s202 + $0x6b0] sm:$0xff]
        %v472 = vld [vmem:[%s202 + $0x6b8] sm:$0xff]
        %v473 = vld [vmem:[%s202 + $0x6c0] sm:$0xff]
        %v474 = vld [vmem:[%s202 + $0x6c8] sm:$0xff]
        %v475 = vld [vmem:[%s202 + $0x6d0] sm:$0xff]
        %v476 = vld [vmem:[%s202 + $0x6d8] sm:$0xff]
        %v477 = vld [vmem:[%s202 + $0x6e0] sm:$0xff]
        %v478 = vld [vmem:[%s202 + $0x6e8] sm:$0xff]
        %v479 = vld [vmem:[%s202 + $0x6f0] sm:$0xff]
        %v480 = vld [vmem:[%s202 + $0x6f8] sm:$0xff]
        %v481 = vld [vmem:[%s202 + $0x700] sm:$0xff]
        %v482 = vld [vmem:[%s202 + $0x708] sm:$0xff]
        %v483 = vld [vmem:[%s202 + $0x710] sm:$0xff]
        %v484 = vld [vmem:[%s202 + $0x718] sm:$0xff]
        %v485 = vld [vmem:[%s202 + $0x720] sm:$0xff]
        %v486 = vld [vmem:[%s202 + $0x728] sm:$0xff]
        %v487 = vld [vmem:[%s202 + $0x730] sm:$0xff]
        %v488 = vld [vmem:[%s202 + $0x738] sm:$0xff]
        %v489 = vld [vmem:[%s202 + $0x740] sm:$0xff]
        %v490 = vld [vmem:[%s202 + $0x748] sm:$0xff]
        %v491 = vld [vmem:[%s202 + $0x750] sm:$0xff]
        %v492 = vld [vmem:[%s202 + $0x758] sm:$0xff]
        %v493 = vld [vmem:[%s202 + $0x760] sm:$0xff]
        %v494 = vld [vmem:[%s202 + $0x768] sm:$0xff]
        %v495 = vld [vmem:[%s202 + $0x770] sm:$0xff]
        %v496 = vld [vmem:[%s202 + $0x778] sm:$0xff]
        %v497 = vld [vmem:[%s202 + $0x780] sm:$0xff]
        %v498 = vld [vmem:[%s202 + $0x788] sm:$0xff]
        %v499 = vld [vmem:[%s202 + $0x790] sm:$0xff]
        %v500 = vld [vmem:[%s202 + $0x798] sm:$0xff]
        %v501 = vld [vmem:[%s202 + $0x7a0] sm:$0xff]
        %v502 = vld [vmem:[%s202 + $0x7a8] sm:$0xff]
        %v503 = vld [vmem:[%s202 + $0x7b0] sm:$0xff]
        %v504 = vld [vmem:[%s202 + $0x7b8] sm:$0xff]
        %v505 = vld [vmem:[%s202 + $0x7c0] sm:$0xff]
        %v506 = vld [vmem:[%s202 + $0x7c8] sm:$0xff]
        %v507 = vld [vmem:[%s202 + $0x7d0] sm:$0xff]
        %v508 = vld [vmem:[%s202 + $0x7d8] sm:$0xff]
        %v509 = vld [vmem:[%s202 + $0x7e0] sm:$0xff]
        %v510 = vld [vmem:[%s202 + $0x7e8] sm:$0xff]
        %v511 = vld [vmem:[%s202 + $0x7f0] sm:$0xff]
        %v512 = vld [vmem:[%s202 + $0x7f8] sm:$0xff]
        %v513 = vld [vmem:[%s202 + $0x800] sm:$0xff]
        %v514 = vld [vmem:[%s202 + $0x808] sm:$0xff]
        %v515 = vld [vmem:[%s202 + $0x810] sm:$0xff]
        %v516 = vld [vmem:[%s202 + $0x818] sm:$0xff]
        %v517 = vld [vmem:[%s202 + $0x820] sm:$0xff]
        %v518 = vld [vmem:[%s202 + $0x828] sm:$0xff]
        %v519 = vld [vmem:[%s202 + $0x830] sm:$0xff]
        %v520 = vld [vmem:[%s202 + $0x838] sm:$0xff]
        %v521 = vld [vmem:[%s202 + $0x840] sm:$0xff]
        %v522 = vld [vmem:[%s202 + $0x848] sm:$0xff]
        %v523 = vld [vmem:[%s202 + $0x850] sm:$0xff]
        %v524 = vld [vmem:[%s202 + $0x858] sm:$0xff]
        %v525 = vld [vmem:[%s202 + $0x860] sm:$0xff]
        %v526 = vld [vmem:[%s202 + $0x868] sm:$0xff]
        %v527 = vld [vmem:[%s202 + $0x870] sm:$0xff]
        %v528 = vld [vmem:[%s202 + $0x878] sm:$0xff]
        %v529 = vld [vmem:[%s202 + $0x880] sm:$0xff]
        %v530 = vld [vmem:[%s202 + $0x888] sm:$0xff]
        %v531 = vld [vmem:[%s202 + $0x890] sm:$0xff]
        %v532 = vld [vmem:[%s202 + $0x898] sm:$0xff]
        %v533 = vld [vmem:[%s202 + $0x8a0] sm:$0xff]
        %v534 = vld [vmem:[%s202 + $0x8a8] sm:$0xff]
        %v535 = vld [vmem:[%s202 + $0x8b0] sm:$0xff]
        %v536 = vld [vmem:[%s202 + $0x8b8] sm:$0xff]
        %v537 = vld [vmem:[%s202 + $0x8c0] sm:$0xff]
        %v538 = vld [vmem:[%s202 + $0x8c8] sm:$0xff]
        %v539 = vld [vmem:[%s202 + $0x8d0] sm:$0xff]
        %v540 = vld [vmem:[%s202 + $0x8d8] sm:$0xff]
        %v541 = vld [vmem:[%s202 + $0x8e0] sm:$0xff]
        %v542 = vld [vmem:[%s202 + $0x8e8] sm:$0xff]
        %v543 = vld [vmem:[%s202 + $0x8f0] sm:$0xff]
        %v544 = vld [vmem:[%s202 + $0x8f8] sm:$0xff]
        %v545 = vld [vmem:[%s202 + $0x900] sm:$0xff]
        %v546 = vld [vmem:[%s202 + $0x908] sm:$0xff]
        %v547 = vld [vmem:[%s202 + $0x910] sm:$0xff]
        %v548 = vld [vmem:[%s202 + $0x918] sm:$0xff]
        %v549 = vld [vmem:[%s202 + $0x920] sm:$0xff]
        %v550 = vld [vmem:[%s202 + $0x928] sm:$0xff]
        %v551 = vld [vmem:[%s202 + $0x930] sm:$0xff]
        %v552 = vld [vmem:[%s202 + $0x938] sm:$0xff]
        %v553 = vld [vmem:[%s202 + $0x940] sm:$0xff]
        %v554 = vld [vmem:[%s202 + $0x948] sm:$0xff]
        %v555 = vld [vmem:[%s202 + $0x950] sm:$0xff]
        %v556 = vld [vmem:[%s202 + $0x958] sm:$0xff]
        %v557 = vld [vmem:[%s202 + $0x960] sm:$0xff]
        %v558 = vld [vmem:[%s202 + $0x968] sm:$0xff]
        %v559 = vld [vmem:[%s202 + $0x970] sm:$0xff]
        %v560 = vld [vmem:[%s202 + $0x978] sm:$0xff]
        %v561 = vld [vmem:[%s202 + $0x980] sm:$0xff]
        %v562 = vld [vmem:[%s202 + $0x988] sm:$0xff]
        %v563 = vld [vmem:[%s202 + $0x990] sm:$0xff]
        %v564 = vld [vmem:[%s202 + $0x998] sm:$0xff]
        %v565 = vld [vmem:[%s202 + $0x9a0] sm:$0xff]
        %v566 = vld [vmem:[%s202 + $0x9a8] sm:$0xff]
        %v567 = vld [vmem:[%s202 + $0x9b0] sm:$0xff]
        %v568 = vld [vmem:[%s202 + $0x9b8] sm:$0xff]
        %v569 = vld [vmem:[%s202 + $0x9c0] sm:$0xff]
        %v570 = vld [vmem:[%s202 + $0x9c8] sm:$0xff]
        %v571 = vld [vmem:[%s202 + $0x9d0] sm:$0xff]
        %v572 = vld [vmem:[%s202 + $0x9d8] sm:$0xff]
        %v573 = vld [vmem:[%s202 + $0x9e0] sm:$0xff]
        %v574 = vld [vmem:[%s202 + $0x9e8] sm:$0xff]
        %v575 = vld [vmem:[%s202 + $0x9f0] sm:$0xff]
        %v576 = vld [vmem:[%s202 + $0x9f8] sm:$0xff]
        %v577 = vld [vmem:[%s202 + $0xa00] sm:$0xff]
        %v578 = vld [vmem:[%s202 + $0xa08] sm:$0xff]
        %v579 = vld [vmem:[%s202 + $0xa10] sm:$0xff]
        %v580 = vld [vmem:[%s202 + $0xa18] sm:$0xff]
        %v581 = vld [vmem:[%s202 + $0xa20] sm:$0xff]
        %v582 = vld [vmem:[%s202 + $0xa28] sm:$0xff]
        %v583 = vld [vmem:[%s202 + $0xa30] sm:$0xff]
        %v584 = vld [vmem:[%s202 + $0xa38] sm:$0xff]
        %v585 = vld [vmem:[%s202 + $0xa40] sm:$0xff]
        %v586 = vld [vmem:[%s202 + $0xa48] sm:$0xff]
        %v587 = vld [vmem:[%s202 + $0xa50] sm:$0xff]
        %v588 = vld [vmem:[%s202 + $0xa58] sm:$0xff]
        %v589 = vld [vmem:[%s202 + $0xa60] sm:$0xff]
        %v590 = vld [vmem:[%s202 + $0xa68] sm:$0xff]
        %v591 = vld [vmem:[%s202 + $0xa70] sm:$0xff]
        %v592 = vld [vmem:[%s202 + $0xa78] sm:$0xff]
        %v593 = vld [vmem:[%s202 + $0xa80] sm:$0xff]
        %v594 = vld [vmem:[%s202 + $0xa88] sm:$0xff]
        %v595 = vld [vmem:[%s202 + $0xa90] sm:$0xff]
        %v596 = vld [vmem:[%s202 + $0xa98] sm:$0xff]
        %v597 = vld [vmem:[%s202 + $0xaa0] sm:$0xff]
        %v598 = vld [vmem:[%s202 + $0xaa8] sm:$0xff]
        %v599 = vld [vmem:[%s202 + $0xab0] sm:$0xff]
        %v600 = vld [vmem:[%s202 + $0xab8] sm:$0xff]
        %v601 = vld [vmem:[%s202 + $0xac0] sm:$0xff]
        %v602 = vld [vmem:[%s202 + $0xac8] sm:$0xff]
        %v603 = vld [vmem:[%s202 + $0xad0] sm:$0xff]
        %v604 = vld [vmem:[%s202 + $0xad8] sm:$0xff]
        %v605 = vld [vmem:[%s202 + $0xae0] sm:$0xff]
        %v606 = vld [vmem:[%s202 + $0xae8] sm:$0xff]
        %v607 = vld [vmem:[%s202 + $0xaf0] sm:$0xff]
        %v608 = vld [vmem:[%s202 + $0xaf8] sm:$0xff]
        %v609 = vld [vmem:[%s202 + $0xb00] sm:$0xff]
        %v610 = vld [vmem:[%s202 + $0xb08] sm:$0xff]
        %v611 = vld [vmem:[%s202 + $0xb10] sm:$0xff]
        %v612 = vld [vmem:[%s202 + $0xb18] sm:$0xff]
        %v613 = vld [vmem:[%s202 + $0xb20] sm:$0xff]
        %v614 = vld [vmem:[%s202 + $0xb28] sm:$0xff]
        %v615 = vld [vmem:[%s202 + $0xb30] sm:$0xff]
        %v616 = vld [vmem:[%s202 + $0xb38] sm:$0xff]
        %v617 = vld [vmem:[%s202 + $0xb40] sm:$0xff]
        %v618 = vld [vmem:[%s202 + $0xb48] sm:$0xff]
        %v619 = vld [vmem:[%s202 + $0xb50] sm:$0xff]
        %v620 = vld [vmem:[%s202 + $0xb58] sm:$0xff]
        %v621 = vld [vmem:[%s202 + $0xb60] sm:$0xff]
        %v622 = vld [vmem:[%s202 + $0xb68] sm:$0xff]
        %v623 = vld [vmem:[%s202 + $0xb70] sm:$0xff]
        %v624 = vld [vmem:[%s202 + $0xb78] sm:$0xff]
        %v625 = vld [vmem:[%s202 + $0xb80] sm:$0xff]
        %v626 = vld [vmem:[%s202 + $0xb88] sm:$0xff]
        %v627 = vld [vmem:[%s202 + $0xb90] sm:$0xff]
        %v628 = vld [vmem:[%s202 + $0xb98] sm:$0xff]
        %v629 = vld [vmem:[%s202 + $0xba0] sm:$0xff]
        %v630 = vld [vmem:[%s202 + $0xba8] sm:$0xff]
        %v631 = vld [vmem:[%s202 + $0xbb0] sm:$0xff]
        %v632 = vld [vmem:[%s202 + $0xbb8] sm:$0xff]
        %v633 = vld [vmem:[%s202 + $0xbc0] sm:$0xff]
        %v634 = vld [vmem:[%s202 + $0xbc8] sm:$0xff]
        %v635 = vld [vmem:[%s202 + $0xbd0] sm:$0xff]
        %v636 = vld [vmem:[%s202 + $0xbd8] sm:$0xff]
        %v637 = vld [vmem:[%s202 + $0xbe0] sm:$0xff]
        %v638 = vld [vmem:[%s202 + $0xbe8] sm:$0xff]
        %v639 = vld [vmem:[%s202 + $0xbf0] sm:$0xff]
        %v640 = vld [vmem:[%s202 + $0xbf8] sm:$0xff]
        %v641 = vld [vmem:[%s202 + $0xc00] sm:$0xff]
        %v642 = vld [vmem:[%s202 + $0xc08] sm:$0xff]
        %v643 = vld [vmem:[%s202 + $0xc10] sm:$0xff]
        %v644 = vld [vmem:[%s202 + $0xc18] sm:$0xff]
        %v645 = vld [vmem:[%s202 + $0xc20] sm:$0xff]
        %v646 = vld [vmem:[%s202 + $0xc28] sm:$0xff]
        %v647 = vld [vmem:[%s202 + $0xc30] sm:$0xff]
        %v648 = vld [vmem:[%s202 + $0xc38] sm:$0xff]
        %v649 = vld [vmem:[%s202 + $0xc40] sm:$0xff]
        %v650 = vld [vmem:[%s202 + $0xc48] sm:$0xff]
        %v651 = vld [vmem:[%s202 + $0xc50] sm:$0xff]
        %v652 = vld [vmem:[%s202 + $0xc58] sm:$0xff]
        %v653 = vld [vmem:[%s202 + $0xc60] sm:$0xff]
        %v654 = vld [vmem:[%s202 + $0xc68] sm:$0xff]
        %v655 = vld [vmem:[%s202 + $0xc70] sm:$0xff]
        %v656 = vld [vmem:[%s202 + $0xc78] sm:$0xff]
        %v657 = vld [vmem:[%s202 + $0xc80] sm:$0xff]
        %v658 = vld [vmem:[%s202 + $0xc88] sm:$0xff]
        %v659 = vld [vmem:[%s202 + $0xc90] sm:$0xff]
        %v660 = vld [vmem:[%s202 + $0xc98] sm:$0xff]
        %v661 = vld [vmem:[%s202 + $0xca0] sm:$0xff]
        %v662 = vld [vmem:[%s202 + $0xca8] sm:$0xff]
        %v663 = vld [vmem:[%s202 + $0xcb0] sm:$0xff]
        %v664 = vld [vmem:[%s202 + $0xcb8] sm:$0xff]
        %v665 = vld [vmem:[%s202 + $0xcc0] sm:$0xff]
        %v666 = vld [vmem:[%s202 + $0xcc8] sm:$0xff]
        %v667 = vld [vmem:[%s202 + $0xcd0] sm:$0xff]
        %v668 = vld [vmem:[%s202 + $0xcd8] sm:$0xff]
        %v669 = vld [vmem:[%s202 + $0xce0] sm:$0xff]
        %v670 = vld [vmem:[%s202 + $0xce8] sm:$0xff]
        %v671 = vld [vmem:[%s202 + $0xcf0] sm:$0xff]
        %v672 = vld [vmem:[%s202 + $0xcf8] sm:$0xff]
        %v673 = vld [vmem:[%s202 + $0xd00] sm:$0xff]
        %v674 = vld [vmem:[%s202 + $0xd08] sm:$0xff]
        %v675 = vld [vmem:[%s202 + $0xd10] sm:$0xff]
        %v676 = vld [vmem:[%s202 + $0xd18] sm:$0xff]
        %v677 = vld [vmem:[%s202 + $0xd20] sm:$0xff]
        %v678 = vld [vmem:[%s202 + $0xd28] sm:$0xff]
        %v679 = vld [vmem:[%s202 + $0xd30] sm:$0xff]
        %v680 = vld [vmem:[%s202 + $0xd38] sm:$0xff]
        %v681 = vld [vmem:[%s202 + $0xd40] sm:$0xff]
        %v682 = vld [vmem:[%s202 + $0xd48] sm:$0xff]
        %v683 = vld [vmem:[%s202 + $0xd50] sm:$0xff]
        %v684 = vld [vmem:[%s202 + $0xd58] sm:$0xff]
        %v685 = vld [vmem:[%s202 + $0xd60] sm:$0xff]
        %v686 = vld [vmem:[%s202 + $0xd68] sm:$0xff]
        %v687 = vld [vmem:[%s202 + $0xd70] sm:$0xff]
        %v688 = vld [vmem:[%s202 + $0xd78] sm:$0xff]
        %v689 = vld [vmem:[%s202 + $0xd80] sm:$0xff]
        %v690 = vld [vmem:[%s202 + $0xd88] sm:$0xff]
        %v691 = vld [vmem:[%s202 + $0xd90] sm:$0xff]
        %v692 = vld [vmem:[%s202 + $0xd98] sm:$0xff]
        %v693 = vld [vmem:[%s202 + $0xda0] sm:$0xff]
        %v694 = vld [vmem:[%s202 + $0xda8] sm:$0xff]
        %v695 = vld [vmem:[%s202 + $0xdb0] sm:$0xff]
        %v696 = vld [vmem:[%s202 + $0xdb8] sm:$0xff]
        %v697 = vld [vmem:[%s202 + $0xdc0] sm:$0xff]
        %v698 = vld [vmem:[%s202 + $0xdc8] sm:$0xff]
        %v699 = vld [vmem:[%s202 + $0xdd0] sm:$0xff]
        %v700 = vld [vmem:[%s202 + $0xdd8] sm:$0xff]
        %v701 = vld [vmem:[%s202 + $0xde0] sm:$0xff]
        %v702 = vld [vmem:[%s202 + $0xde8] sm:$0xff]
        %v703 = vld [vmem:[%s202 + $0xdf0] sm:$0xff]
        %v704 = vld [vmem:[%s202 + $0xdf8] sm:$0xff]
        %v712 = vcombine.high %v250, %v250
        %v714 = vunpack.c.l.s4 1983009808
        %v715 = vunpack.c.0.s8 %v714
        %v716 = vlaneseq
        %v717 = vshrl.u32 %v716, 7
        %v718 = vsub.s32 %v715, %v717
        %v719 = vrot.slane %v250, %v718
        %v721 = vunpack.c.l.s4 1983009808
        %v722 = vunpack.c.0.s8 %v721
        %v723 = vlaneseq
        %v724 = vshrl.u32 %v723, 7
        %v725 = vsub.s32 %v722, %v724
        %v726 = vrot.slane %v712, %v725
        %v727 = vcombine.high %v719, %v719
        %v728 = vcombine.high %v726, %v726
        %v729 = vcombine.high %v251, %v251
        %v731 = vunpack.c.l.s4 1983009808
        %v732 = vunpack.c.0.s8 %v731
        %v733 = vlaneseq
        %v734 = vshrl.u32 %v733, 7
        %v735 = vsub.s32 %v732, %v734
        %v736 = vrot.slane %v251, %v735
        %v738 = vunpack.c.l.s4 1983009808
        %v739 = vunpack.c.0.s8 %v738
        %v740 = vlaneseq
        %v741 = vshrl.u32 %v740, 7
        %v742 = vsub.s32 %v739, %v741
        %v743 = vrot.slane %v729, %v742
        %v744 = vcombine.high %v736, %v736
        %v745 = vcombine.high %v743, %v743
        %v746 = vcombine.high %v252, %v252
        %v748 = vunpack.c.l.s4 1983009808
        %v749 = vunpack.c.0.s8 %v748
        %v750 = vlaneseq
        %v751 = vshrl.u32 %v750, 7
        %v752 = vsub.s32 %v749, %v751
        %v753 = vrot.slane %v252, %v752
        %v755 = vunpack.c.l.s4 1983009808
        %v756 = vunpack.c.0.s8 %v755
        %v757 = vlaneseq
        %v758 = vshrl.u32 %v757, 7
        %v759 = vsub.s32 %v756, %v758
        %v760 = vrot.slane %v746, %v759
        %v761 = vcombine.high %v753, %v753
        %v762 = vcombine.high %v760, %v760
        %v763 = vcombine.high %v253, %v253
        %v765 = vunpack.c.l.s4 1983009808
        %v766 = vunpack.c.0.s8 %v765
        %v767 = vlaneseq
        %v768 = vshrl.u32 %v767, 7
        %v769 = vsub.s32 %v766, %v768
        %v770 = vrot.slane %v253, %v769
        %v772 = vunpack.c.l.s4 1983009808
        %v773 = vunpack.c.0.s8 %v772
        %v774 = vlaneseq
        %v775 = vshrl.u32 %v774, 7
        %v776 = vsub.s32 %v773, %v775
        %v777 = vrot.slane %v763, %v776
        %v778 = vcombine.high %v770, %v770
        %v779 = vcombine.high %v777, %v777
        %v780 = vcombine.high %v254, %v254
        %v782 = vunpack.c.l.s4 1983009808
        %v783 = vunpack.c.0.s8 %v782
        %v784 = vlaneseq
        %v785 = vshrl.u32 %v784, 7
        %v786 = vsub.s32 %v783, %v785
        %v787 = vrot.slane %v254, %v786
        %v789 = vunpack.c.l.s4 1983009808
        %v790 = vunpack.c.0.s8 %v789
        %v791 = vlaneseq
        %v792 = vshrl.u32 %v791, 7
        %v793 = vsub.s32 %v790, %v792
        %v794 = vrot.slane %v780, %v793
        %v795 = vcombine.high %v787, %v787
        %v796 = vcombine.high %v794, %v794
        %v797 = vcombine.high %v255, %v255
        %v799 = vunpack.c.l.s4 1983009808
        %v800 = vunpack.c.0.s8 %v799
        %v801 = vlaneseq
        %v802 = vshrl.u32 %v801, 7
        %v803 = vsub.s32 %v800, %v802
        %v804 = vrot.slane %v255, %v803
        %v806 = vunpack.c.l.s4 1983009808
        %v807 = vunpack.c.0.s8 %v806
        %v808 = vlaneseq
        %v809 = vshrl.u32 %v808, 7
        %v810 = vsub.s32 %v807, %v809
        %v811 = vrot.slane %v797, %v810
        %v812 = vcombine.high %v804, %v804
        %v813 = vcombine.high %v811, %v811
        %v814 = vcombine.high %v256, %v256
        %v816 = vunpack.c.l.s4 1983009808
        %v817 = vunpack.c.0.s8 %v816
        %v818 = vlaneseq
        %v819 = vshrl.u32 %v818, 7
        %v820 = vsub.s32 %v817, %v819
        %v821 = vrot.slane %v256, %v820
        %v823 = vunpack.c.l.s4 1983009808
        %v824 = vunpack.c.0.s8 %v823
        %v825 = vlaneseq
        %v826 = vshrl.u32 %v825, 7
        %v827 = vsub.s32 %v824, %v826
        %v828 = vrot.slane %v814, %v827
        %v829 = vcombine.high %v821, %v821
        %v830 = vcombine.high %v828, %v828
        %859 = vmatprep.subr.mxu0 0.0
        %860 = vmatpush1.msra.mxu0 %v257
        %861 = vmatprep.subr.mxu0 0.0
        %862 = vmatpush1.msra.mxu0 %v258
        %863 = vmatprep.subr.mxu0 0.0
        %864 = vmatpush1.msra.mxu0 %v259
        %865 = vmatprep.subr.mxu0 0.0
        %866 = vmatpush1.msra.mxu0 %v260
        %867 = vmatprep.subr.mxu0 0.0
        %868 = vmatpush1.msra.mxu0 %v261
        %869 = vmatprep.subr.mxu0 0.0
        %870 = vmatpush1.msra.mxu0 %v262
        %871 = vmatprep.subr.mxu0 0.0
        %872 = vmatpush1.msra.mxu0 %v263
        %873 = vmatprep.subr.mxu0 0.0
        %874 = vmatpush1.msra.mxu0 %v264
        %875 = vmatprep.subr.mxu0 0.0
        %876 = vmatpush1.msra.mxu0 %v265
        %877 = vmatprep.subr.mxu0 0.0
        %878 = vmatpush1.msra.mxu0 %v266
        %879 = vmatprep.subr.mxu0 0.0
        %880 = vmatpush1.msra.mxu0 %v267
        %881 = vmatprep.subr.mxu0 0.0
        %882 = vmatpush1.msra.mxu0 %v268
        %883 = vmatprep.subr.mxu0 0.0
        %884 = vmatpush1.msra.mxu0 %v269
        %885 = vmatprep.subr.mxu0 0.0
        %886 = vmatpush1.msra.mxu0 %v270
        %887 = vmatprep.subr.mxu0 0.0
        %888 = vmatpush1.msra.mxu0 %v271
        %889 = vmatprep.subr.mxu0 0.0
        %890 = vmatpush1.msra.mxu0 %v272
        %891 = vmatprep.subr.mxu0 0.0
        %892 = vmatpush1.msra.mxu0 %v273
        %893 = vmatprep.subr.mxu0 0.0
        %894 = vmatpush1.msra.mxu0 %v274
        %895 = vmatprep.subr.mxu0 0.0
        %896 = vmatpush1.msra.mxu0 %v275
        %897 = vmatprep.subr.mxu0 0.0
        %898 = vmatpush1.msra.mxu0 %v276
        %899 = vmatprep.subr.mxu0 0.0
        %900 = vmatpush1.msra.mxu0 %v277
        %901 = vmatprep.subr.mxu0 0.0
        %902 = vmatpush1.msra.mxu0 %v278
        %903 = vmatprep.subr.mxu0 0.0
        %904 = vmatpush1.msra.mxu0 %v279
        %905 = vmatprep.subr.mxu0 0.0
        %906 = vmatpush1.msra.mxu0 %v280
        %907 = vmatprep.subr.mxu0 0.0
        %908 = vmatpush1.msra.mxu0 %v281
        %909 = vmatprep.subr.mxu0 0.0
        %910 = vmatpush1.msra.mxu0 %v282
        %911 = vmatprep.subr.mxu0 0.0
        %912 = vmatpush1.msra.mxu0 %v283
        %913 = vmatprep.subr.mxu0 0.0
        %914 = vmatpush1.msra.mxu0 %v284
        %915 = vmatprep.subr.mxu0 0.0
        %916 = vmatpush1.msra.mxu0 %v285
        %917 = vmatprep.subr.mxu0 0.0
        %918 = vmatpush1.msra.mxu0 %v286
        %919 = vmatprep.subr.mxu0 0.0
        %920 = vmatpush1.msra.mxu0 %v287
        %921 = vmatprep.subr.mxu0 0.0
        %922 = vmatpush1.msra.mxu0 %v288
        %923 = vmatprep.mubr.f32.mxu0 %v727
        %924 = vmatmul.mubr.f32.gmra.mrb[0].mxu0 %v719
        %v925 = vpop.f32.mrb[0].mxu0
        %v926 = vadd.f32 0.0, %v925
        %v927 = vpop.f32.mrb[0].mxu0
        %928 = vdwg.mxu0
        %929 = vmatprep.subr.mxu0 0.0
        %930 = vmatpush1.msra.mxu0 %v289
        %931 = vmatprep.subr.mxu0 0.0
        %932 = vmatpush1.msra.mxu0 %v290
        %933 = vmatprep.subr.mxu0 0.0
        %934 = vmatpush1.msra.mxu0 %v291
        %935 = vmatprep.subr.mxu0 0.0
        %936 = vmatpush1.msra.mxu0 %v292
        %937 = vmatprep.subr.mxu0 0.0
        %938 = vmatpush1.msra.mxu0 %v293
        %939 = vmatprep.subr.mxu0 0.0
        %940 = vmatpush1.msra.mxu0 %v294
        %941 = vmatprep.subr.mxu0 0.0
        %942 = vmatpush1.msra.mxu0 %v295
        %943 = vmatprep.subr.mxu0 0.0
        %944 = vmatpush1.msra.mxu0 %v296
        %945 = vmatprep.subr.mxu0 0.0
        %946 = vmatpush1.msra.mxu0 %v297
        %947 = vmatprep.subr.mxu0 0.0
        %948 = vmatpush1.msra.mxu0 %v298
        %949 = vmatprep.subr.mxu0 0.0
        %950 = vmatpush1.msra.mxu0 %v299
        %951 = vmatprep.subr.mxu0 0.0
        %952 = vmatpush1.msra.mxu0 %v300
        %953 = vmatprep.subr.mxu0 0.0
        %954 = vmatpush1.msra.mxu0 %v301
        %955 = vmatprep.subr.mxu0 0.0
        %956 = vmatpush1.msra.mxu0 %v302
        %957 = vmatprep.subr.mxu0 0.0
        %958 = vmatpush1.msra.mxu0 %v303
        %959 = vmatprep.subr.mxu0 0.0
        %960 = vmatpush1.msra.mxu0 %v304
        %961 = vmatprep.subr.mxu0 0.0
        %962 = vmatpush1.msra.mxu0 %v305
        %963 = vmatprep.subr.mxu0 0.0
        %964 = vmatpush1.msra.mxu0 %v306
        %965 = vmatprep.subr.mxu0 0.0
        %966 = vmatpush1.msra.mxu0 %v307
        %967 = vmatprep.subr.mxu0 0.0
        %968 = vmatpush1.msra.mxu0 %v308
        %969 = vmatprep.subr.mxu0 0.0
        %970 = vmatpush1.msra.mxu0 %v309
        %971 = vmatprep.subr.mxu0 0.0
        %972 = vmatpush1.msra.mxu0 %v310
        %973 = vmatprep.subr.mxu0 0.0
        %974 = vmatpush1.msra.mxu0 %v311
        %975 = vmatprep.subr.mxu0 0.0
        %976 = vmatpush1.msra.mxu0 %v312
        %977 = vmatprep.subr.mxu0 0.0
        %978 = vmatpush1.msra.mxu0 %v313
        %979 = vmatprep.subr.mxu0 0.0
        %980 = vmatpush1.msra.mxu0 %v314
        %981 = vmatprep.subr.mxu0 0.0
        %982 = vmatpush1.msra.mxu0 %v315
        %983 = vmatprep.subr.mxu0 0.0
        %984 = vmatpush1.msra.mxu0 %v316
        %985 = vmatprep.subr.mxu0 0.0
        %986 = vmatpush1.msra.mxu0 %v317
        %987 = vmatprep.subr.mxu0 0.0
        %988 = vmatpush1.msra.mxu0 %v318
        %989 = vmatprep.subr.mxu0 0.0
        %990 = vmatpush1.msra.mxu0 %v319
        %991 = vmatprep.subr.mxu0 0.0
        %992 = vmatpush1.msra.mxu0 %v320
        %993 = vmatprep.mubr.f32.mxu0 %v728
        %994 = vmatmul.mubr.f32.gmra.mrb[0].mxu0 %v726
        %v995 = vpop.f32.mrb[0].mxu0
        %v996 = vadd.f32 %v926, %v995
        %v997 = vpop.f32.mrb[0].mxu0
        %998 = vdwg.mxu0
        %999 = vmatprep.subr.mxu0 0.0
        %1000 = vmatpush1.msra.mxu0 %v321
        %1001 = vmatprep.subr.mxu0 0.0
        %1002 = vmatpush1.msra.mxu0 %v322
        %1003 = vmatprep.subr.mxu0 0.0
        %1004 = vmatpush1.msra.mxu0 %v323
        %1005 = vmatprep.subr.mxu0 0.0
        %1006 = vmatpush1.msra.mxu0 %v324
        %1007 = vmatprep.subr.mxu0 0.0
        %1008 = vmatpush1.msra.mxu0 %v325
        %1009 = vmatprep.subr.mxu0 0.0
        %1010 = vmatpush1.msra.mxu0 %v326
        %1011 = vmatprep.subr.mxu0 0.0
        %1012 = vmatpush1.msra.mxu0 %v327
        %1013 = vmatprep.subr.mxu0 0.0
        %1014 = vmatpush1.msra.mxu0 %v328
        %1015 = vmatprep.subr.mxu0 0.0
        %1016 = vmatpush1.msra.mxu0 %v329
        %1017 = vmatprep.subr.mxu0 0.0
        %1018 = vmatpush1.msra.mxu0 %v330
        %1019 = vmatprep.subr.mxu0 0.0
        %1020 = vmatpush1.msra.mxu0 %v331
        %1021 = vmatprep.subr.mxu0 0.0
        %1022 = vmatpush1.msra.mxu0 %v332
        %1023 = vmatprep.subr.mxu0 0.0
        %1024 = vmatpush1.msra.mxu0 %v333
        %1025 = vmatprep.subr.mxu0 0.0
        %1026 = vmatpush1.msra.mxu0 %v334
        %1027 = vmatprep.subr.mxu0 0.0
        %1028 = vmatpush1.msra.mxu0 %v335
        %1029 = vmatprep.subr.mxu0 0.0
        %1030 = vmatpush1.msra.mxu0 %v336
        %1031 = vmatprep.subr.mxu0 0.0
        %1032 = vmatpush1.msra.mxu0 %v337
        %1033 = vmatprep.subr.mxu0 0.0
        %1034 = vmatpush1.msra.mxu0 %v338
        %1035 = vmatprep.subr.mxu0 0.0
        %1036 = vmatpush1.msra.mxu0 %v339
        %1037 = vmatprep.subr.mxu0 0.0
        %1038 = vmatpush1.msra.mxu0 %v340
        %1039 = vmatprep.subr.mxu0 0.0
        %1040 = vmatpush1.msra.mxu0 %v341
        %1041 = vmatprep.subr.mxu0 0.0
        %1042 = vmatpush1.msra.mxu0 %v342
        %1043 = vmatprep.subr.mxu0 0.0
        %1044 = vmatpush1.msra.mxu0 %v343
        %1045 = vmatprep.subr.mxu0 0.0
        %1046 = vmatpush1.msra.mxu0 %v344
        %1047 = vmatprep.subr.mxu0 0.0
        %1048 = vmatpush1.msra.mxu0 %v345
        %1049 = vmatprep.subr.mxu0 0.0
        %1050 = vmatpush1.msra.mxu0 %v346
        %1051 = vmatprep.subr.mxu0 0.0
        %1052 = vmatpush1.msra.mxu0 %v347
        %1053 = vmatprep.subr.mxu0 0.0
        %1054 = vmatpush1.msra.mxu0 %v348
        %1055 = vmatprep.subr.mxu0 0.0
        %1056 = vmatpush1.msra.mxu0 %v349
        %1057 = vmatprep.subr.mxu0 0.0
        %1058 = vmatpush1.msra.mxu0 %v350
        %1059 = vmatprep.subr.mxu0 0.0
        %1060 = vmatpush1.msra.mxu0 %v351
        %1061 = vmatprep.subr.mxu0 0.0
        %1062 = vmatpush1.msra.mxu0 %v352
        %1063 = vmatprep.mubr.f32.mxu0 %v744
        %1064 = vmatmul.mubr.f32.gmra.mrb[0].mxu0 %v736
        %v1065 = vpop.f32.mrb[0].mxu0
        %v1066 = vadd.f32 %v996, %v1065
        %v1067 = vpop.f32.mrb[0].mxu0
        %1068 = vdwg.mxu0
        %1069 = vmatprep.subr.mxu0 0.0
        %1070 = vmatpush1.msra.mxu0 %v353
        %1071 = vmatprep.subr.mxu0 0.0
        %1072 = vmatpush1.msra.mxu0 %v354
        %1073 = vmatprep.subr.mxu0 0.0
        %1074 = vmatpush1.msra.mxu0 %v355
        %1075 = vmatprep.subr.mxu0 0.0
        %1076 = vmatpush1.msra.mxu0 %v356
        %1077 = vmatprep.subr.mxu0 0.0
        %1078 = vmatpush1.msra.mxu0 %v357
        %1079 = vmatprep.subr.mxu0 0.0
        %1080 = vmatpush1.msra.mxu0 %v358
        %1081 = vmatprep.subr.mxu0 0.0
        %1082 = vmatpush1.msra.mxu0 %v359
        %1083 = vmatprep.subr.mxu0 0.0
        %1084 = vmatpush1.msra.mxu0 %v360
        %1085 = vmatprep.subr.mxu0 0.0
        %1086 = vmatpush1.msra.mxu0 %v361
        %1087 = vmatprep.subr.mxu0 0.0
        %1088 = vmatpush1.msra.mxu0 %v362
        %1089 = vmatprep.subr.mxu0 0.0
        %1090 = vmatpush1.msra.mxu0 %v363
        %1091 = vmatprep.subr.mxu0 0.0
        %1092 = vmatpush1.msra.mxu0 %v364
        %1093 = vmatprep.subr.mxu0 0.0
        %1094 = vmatpush1.msra.mxu0 %v365
        %1095 = vmatprep.subr.mxu0 0.0
        %1096 = vmatpush1.msra.mxu0 %v366
        %1097 = vmatprep.subr.mxu0 0.0
        %1098 = vmatpush1.msra.mxu0 %v367
        %1099 = vmatprep.subr.mxu0 0.0
        %1100 = vmatpush1.msra.mxu0 %v368
        %1101 = vmatprep.subr.mxu0 0.0
        %1102 = vmatpush1.msra.mxu0 %v369
        %1103 = vmatprep.subr.mxu0 0.0
        %1104 = vmatpush1.msra.mxu0 %v370
        %1105 = vmatprep.subr.mxu0 0.0
        %1106 = vmatpush1.msra.mxu0 %v371
        %1107 = vmatprep.subr.mxu0 0.0
        %1108 = vmatpush1.msra.mxu0 %v372
        %1109 = vmatprep.subr.mxu0 0.0
        %1110 = vmatpush1.msra.mxu0 %v373
        %1111 = vmatprep.subr.mxu0 0.0
        %1112 = vmatpush1.msra.mxu0 %v374
        %1113 = vmatprep.subr.mxu0 0.0
        %1114 = vmatpush1.msra.mxu0 %v375
        %1115 = vmatprep.subr.mxu0 0.0
        %1116 = vmatpush1.msra.mxu0 %v376
        %1117 = vmatprep.subr.mxu0 0.0
        %1118 = vmatpush1.msra.mxu0 %v377
        %1119 = vmatprep.subr.mxu0 0.0
        %1120 = vmatpush1.msra.mxu0 %v378
        %1121 = vmatprep.subr.mxu0 0.0
        %1122 = vmatpush1.msra.mxu0 %v379
        %1123 = vmatprep.subr.mxu0 0.0
        %1124 = vmatpush1.msra.mxu0 %v380
        %1125 = vmatprep.subr.mxu0 0.0
        %1126 = vmatpush1.msra.mxu0 %v381
        %1127 = vmatprep.subr.mxu0 0.0
        %1128 = vmatpush1.msra.mxu0 %v382
        %1129 = vmatprep.subr.mxu0 0.0
        %1130 = vmatpush1.msra.mxu0 %v383
        %1131 = vmatprep.subr.mxu0 0.0
        %1132 = vmatpush1.msra.mxu0 %v384
        %1133 = vmatprep.mubr.f32.mxu0 %v745
        %1134 = vmatmul.mubr.f32.gmra.mrb[0].mxu0 %v743
        %v1135 = vpop.f32.mrb[0].mxu0
        %v1136 = vadd.f32 %v1066, %v1135
        %v1137 = vpop.f32.mrb[0].mxu0
        %1138 = vdwg.mxu0
        %1139 = vmatprep.subr.mxu0 0.0
        %1140 = vmatpush1.msra.mxu0 %v385
        %1141 = vmatprep.subr.mxu0 0.0
        %1142 = vmatpush1.msra.mxu0 %v386
        %1143 = vmatprep.subr.mxu0 0.0
        %1144 = vmatpush1.msra.mxu0 %v387
        %1145 = vmatprep.subr.mxu0 0.0
        %1146 = vmatpush1.msra.mxu0 %v388
        %1147 = vmatprep.subr.mxu0 0.0
        %1148 = vmatpush1.msra.mxu0 %v389
        %1149 = vmatprep.subr.mxu0 0.0
        %1150 = vmatpush1.msra.mxu0 %v390
        %1151 = vmatprep.subr.mxu0 0.0
        %1152 = vmatpush1.msra.mxu0 %v391
        %1153 = vmatprep.subr.mxu0 0.0
        %1154 = vmatpush1.msra.mxu0 %v392
        %1155 = vmatprep.subr.mxu0 0.0
        %1156 = vmatpush1.msra.mxu0 %v393
        %1157 = vmatprep.subr.mxu0 0.0
        %1158 = vmatpush1.msra.mxu0 %v394
        %1159 = vmatprep.subr.mxu0 0.0
        %1160 = vmatpush1.msra.mxu0 %v395
        %1161 = vmatprep.subr.mxu0 0.0
        %1162 = vmatpush1.msra.mxu0 %v396
        %1163 = vmatprep.subr.mxu0 0.0
        %1164 = vmatpush1.msra.mxu0 %v397
        %1165 = vmatprep.subr.mxu0 0.0
        %1166 = vmatpush1.msra.mxu0 %v398
        %1167 = vmatprep.subr.mxu0 0.0
        %1168 = vmatpush1.msra.mxu0 %v399
        %1169 = vmatprep.subr.mxu0 0.0
        %1170 = vmatpush1.msra.mxu0 %v400
        %1171 = vmatprep.subr.mxu0 0.0
        %1172 = vmatpush1.msra.mxu0 %v401
        %1173 = vmatprep.subr.mxu0 0.0
        %1174 = vmatpush1.msra.mxu0 %v402
        %1175 = vmatprep.subr.mxu0 0.0
        %1176 = vmatpush1.msra.mxu0 %v403
        %1177 = vmatprep.subr.mxu0 0.0
        %1178 = vmatpush1.msra.mxu0 %v404
        %1179 = vmatprep.subr.mxu0 0.0
        %1180 = vmatpush1.msra.mxu0 %v405
        %1181 = vmatprep.subr.mxu0 0.0
        %1182 = vmatpush1.msra.mxu0 %v406
        %1183 = vmatprep.subr.mxu0 0.0
        %1184 = vmatpush1.msra.mxu0 %v407
        %1185 = vmatprep.subr.mxu0 0.0
        %1186 = vmatpush1.msra.mxu0 %v408
        %1187 = vmatprep.subr.mxu0 0.0
        %1188 = vmatpush1.msra.mxu0 %v409
        %1189 = vmatprep.subr.mxu0 0.0
        %1190 = vmatpush1.msra.mxu0 %v410
        %1191 = vmatprep.subr.mxu0 0.0
        %1192 = vmatpush1.msra.mxu0 %v411
        %1193 = vmatprep.subr.mxu0 0.0
        %1194 = vmatpush1.msra.mxu0 %v412
        %1195 = vmatprep.subr.mxu0 0.0
        %1196 = vmatpush1.msra.mxu0 %v413
        %1197 = vmatprep.subr.mxu0 0.0
        %1198 = vmatpush1.msra.mxu0 %v414
        %1199 = vmatprep.subr.mxu0 0.0
        %1200 = vmatpush1.msra.mxu0 %v415
        %1201 = vmatprep.subr.mxu0 0.0
        %1202 = vmatpush1.msra.mxu0 %v416
        %1203 = vmatprep.mubr.f32.mxu0 %v761
        %1204 = vmatmul.mubr.f32.gmra.mrb[0].mxu0 %v753
        %v1205 = vpop.f32.mrb[0].mxu0
        %v1206 = vadd.f32 %v1136, %v1205
        %v1207 = vpop.f32.mrb[0].mxu0
        %1208 = vdwg.mxu0
        %1209 = vmatprep.subr.mxu0 0.0
        %1210 = vmatpush1.msra.mxu0 %v417
        %1211 = vmatprep.subr.mxu0 0.0
        %1212 = vmatpush1.msra.mxu0 %v418
        %1213 = vmatprep.subr.mxu0 0.0
        %1214 = vmatpush1.msra.mxu0 %v419
        %1215 = vmatprep.subr.mxu0 0.0
        %1216 = vmatpush1.msra.mxu0 %v420
        %1217 = vmatprep.subr.mxu0 0.0
        %1218 = vmatpush1.msra.mxu0 %v421
        %1219 = vmatprep.subr.mxu0 0.0
        %1220 = vmatpush1.msra.mxu0 %v422
        %1221 = vmatprep.subr.mxu0 0.0
        %1222 = vmatpush1.msra.mxu0 %v423
        %1223 = vmatprep.subr.mxu0 0.0
        %1224 = vmatpush1.msra.mxu0 %v424
        %1225 = vmatprep.subr.mxu0 0.0
        %1226 = vmatpush1.msra.mxu0 %v425
        %1227 = vmatprep.subr.mxu0 0.0
        %1228 = vmatpush1.msra.mxu0 %v426
        %1229 = vmatprep.subr.mxu0 0.0
        %1230 = vmatpush1.msra.mxu0 %v427
        %1231 = vmatprep.subr.mxu0 0.0
        %1232 = vmatpush1.msra.mxu0 %v428
        %1233 = vmatprep.subr.mxu0 0.0
        %1234 = vmatpush1.msra.mxu0 %v429
        %1235 = vmatprep.subr.mxu0 0.0
        %1236 = vmatpush1.msra.mxu0 %v430
        %1237 = vmatprep.subr.mxu0 0.0
        %1238 = vmatpush1.msra.mxu0 %v431
        %1239 = vmatprep.subr.mxu0 0.0
        %1240 = vmatpush1.msra.mxu0 %v432
        %1241 = vmatprep.subr.mxu0 0.0
        %1242 = vmatpush1.msra.mxu0 %v433
        %1243 = vmatprep.subr.mxu0 0.0
        %1244 = vmatpush1.msra.mxu0 %v434
        %1245 = vmatprep.subr.mxu0 0.0
        %1246 = vmatpush1.msra.mxu0 %v435
        %1247 = vmatprep.subr.mxu0 0.0
        %1248 = vmatpush1.msra.mxu0 %v436
        %1249 = vmatprep.subr.mxu0 0.0
        %1250 = vmatpush1.msra.mxu0 %v437
        %1251 = vmatprep.subr.mxu0 0.0
        %1252 = vmatpush1.msra.mxu0 %v438
        %1253 = vmatprep.subr.mxu0 0.0
        %1254 = vmatpush1.msra.mxu0 %v439
        %1255 = vmatprep.subr.mxu0 0.0
        %1256 = vmatpush1.msra.mxu0 %v440
        %1257 = vmatprep.subr.mxu0 0.0
        %1258 = vmatpush1.msra.mxu0 %v441
        %1259 = vmatprep.subr.mxu0 0.0
        %1260 = vmatpush1.msra.mxu0 %v442
        %1261 = vmatprep.subr.mxu0 0.0
        %1262 = vmatpush1.msra.mxu0 %v443
        %1263 = vmatprep.subr.mxu0 0.0
        %1264 = vmatpush1.msra.mxu0 %v444
        %1265 = vmatprep.subr.mxu0 0.0
        %1266 = vmatpush1.msra.mxu0 %v445
        %1267 = vmatprep.subr.mxu0 0.0
        %1268 = vmatpush1.msra.mxu0 %v446
        %1269 = vmatprep.subr.mxu0 0.0
        %1270 = vmatpush1.msra.mxu0 %v447
        %1271 = vmatprep.subr.mxu0 0.0
        %1272 = vmatpush1.msra.mxu0 %v448
        %1273 = vmatprep.mubr.f32.mxu0 %v762
        %1274 = vmatmul.mubr.f32.gmra.mrb[0].mxu0 %v760
        %v1275 = vpop.f32.mrb[0].mxu0
        %v1276 = vadd.f32 %v1206, %v1275
        %v1277 = vpop.f32.mrb[0].mxu0
        %1278 = vdwg.mxu0
        %1279 = vmatprep.subr.mxu0 0.0
        %1280 = vmatpush1.msra.mxu0 %v449
        %1281 = vmatprep.subr.mxu0 0.0
        %1282 = vmatpush1.msra.mxu0 %v450
        %1283 = vmatprep.subr.mxu0 0.0
        %1284 = vmatpush1.msra.mxu0 %v451
        %1285 = vmatprep.subr.mxu0 0.0
        %1286 = vmatpush1.msra.mxu0 %v452
        %1287 = vmatprep.subr.mxu0 0.0
        %1288 = vmatpush1.msra.mxu0 %v453
        %1289 = vmatprep.subr.mxu0 0.0
        %1290 = vmatpush1.msra.mxu0 %v454
        %1291 = vmatprep.subr.mxu0 0.0
        %1292 = vmatpush1.msra.mxu0 %v455
        %1293 = vmatprep.subr.mxu0 0.0
        %1294 = vmatpush1.msra.mxu0 %v456
        %1295 = vmatprep.subr.mxu0 0.0
        %1296 = vmatpush1.msra.mxu0 %v457
        %1297 = vmatprep.subr.mxu0 0.0
        %1298 = vmatpush1.msra.mxu0 %v458
        %1299 = vmatprep.subr.mxu0 0.0
        %1300 = vmatpush1.msra.mxu0 %v459
        %1301 = vmatprep.subr.mxu0 0.0
        %1302 = vmatpush1.msra.mxu0 %v460
        %1303 = vmatprep.subr.mxu0 0.0
        %1304 = vmatpush1.msra.mxu0 %v461
        %1305 = vmatprep.subr.mxu0 0.0
        %1306 = vmatpush1.msra.mxu0 %v462
        %1307 = vmatprep.subr.mxu0 0.0
        %1308 = vmatpush1.msra.mxu0 %v463
        %1309 = vmatprep.subr.mxu0 0.0
        %1310 = vmatpush1.msra.mxu0 %v464
        %1311 = vmatprep.subr.mxu0 0.0
        %1312 = vmatpush1.msra.mxu0 %v465
        %1313 = vmatprep.subr.mxu0 0.0
        %1314 = vmatpush1.msra.mxu0 %v466
        %1315 = vmatprep.subr.mxu0 0.0
        %1316 = vmatpush1.msra.mxu0 %v467
        %1317 = vmatprep.subr.mxu0 0.0
        %1318 = vmatpush1.msra.mxu0 %v468
        %1319 = vmatprep.subr.mxu0 0.0
        %1320 = vmatpush1.msra.mxu0 %v469
        %1321 = vmatprep.subr.mxu0 0.0
        %1322 = vmatpush1.msra.mxu0 %v470
        %1323 = vmatprep.subr.mxu0 0.0
        %1324 = vmatpush1.msra.mxu0 %v471
        %1325 = vmatprep.subr.mxu0 0.0
        %1326 = vmatpush1.msra.mxu0 %v472
        %1327 = vmatprep.subr.mxu0 0.0
        %1328 = vmatpush1.msra.mxu0 %v473
        %1329 = vmatprep.subr.mxu0 0.0
        %1330 = vmatpush1.msra.mxu0 %v474
        %1331 = vmatprep.subr.mxu0 0.0
        %1332 = vmatpush1.msra.mxu0 %v475
        %1333 = vmatprep.subr.mxu0 0.0
        %1334 = vmatpush1.msra.mxu0 %v476
        %1335 = vmatprep.subr.mxu0 0.0
        %1336 = vmatpush1.msra.mxu0 %v477
        %1337 = vmatprep.subr.mxu0 0.0
        %1338 = vmatpush1.msra.mxu0 %v478
        %1339 = vmatprep.subr.mxu0 0.0
        %1340 = vmatpush1.msra.mxu0 %v479
        %1341 = vmatprep.subr.mxu0 0.0
        %1342 = vmatpush1.msra.mxu0 %v480
        %1343 = vmatprep.mubr.f32.mxu0 %v778
        %1344 = vmatmul.mubr.f32.gmra.mrb[0].mxu0 %v770
        %v1345 = vpop.f32.mrb[0].mxu0
        %v1346 = vadd.f32 %v1276, %v1345
        %v1347 = vpop.f32.mrb[0].mxu0
        %1348 = vdwg.mxu0
        %1349 = vmatprep.subr.mxu0 0.0
        %1350 = vmatpush1.msra.mxu0 %v481
        %1351 = vmatprep.subr.mxu0 0.0
        %1352 = vmatpush1.msra.mxu0 %v482
        %1353 = vmatprep.subr.mxu0 0.0
        %1354 = vmatpush1.msra.mxu0 %v483
        %1355 = vmatprep.subr.mxu0 0.0
        %1356 = vmatpush1.msra.mxu0 %v484
        %1357 = vmatprep.subr.mxu0 0.0
        %1358 = vmatpush1.msra.mxu0 %v485
        %1359 = vmatprep.subr.mxu0 0.0
        %1360 = vmatpush1.msra.mxu0 %v486
        %1361 = vmatprep.subr.mxu0 0.0
        %1362 = vmatpush1.msra.mxu0 %v487
        %1363 = vmatprep.subr.mxu0 0.0
        %1364 = vmatpush1.msra.mxu0 %v488
        %1365 = vmatprep.subr.mxu0 0.0
        %1366 = vmatpush1.msra.mxu0 %v489
        %1367 = vmatprep.subr.mxu0 0.0
        %1368 = vmatpush1.msra.mxu0 %v490
        %1369 = vmatprep.subr.mxu0 0.0
        %1370 = vmatpush1.msra.mxu0 %v491
        %1371 = vmatprep.subr.mxu0 0.0
        %1372 = vmatpush1.msra.mxu0 %v492
        %1373 = vmatprep.subr.mxu0 0.0
        %1374 = vmatpush1.msra.mxu0 %v493
        %1375 = vmatprep.subr.mxu0 0.0
        %1376 = vmatpush1.msra.mxu0 %v494
        %1377 = vmatprep.subr.mxu0 0.0
        %1378 = vmatpush1.msra.mxu0 %v495
        %1379 = vmatprep.subr.mxu0 0.0
        %1380 = vmatpush1.msra.mxu0 %v496
        %1381 = vmatprep.subr.mxu0 0.0
        %1382 = vmatpush1.msra.mxu0 %v497
        %1383 = vmatprep.subr.mxu0 0.0
        %1384 = vmatpush1.msra.mxu0 %v498
        %1385 = vmatprep.subr.mxu0 0.0
        %1386 = vmatpush1.msra.mxu0 %v499
        %1387 = vmatprep.subr.mxu0 0.0
        %1388 = vmatpush1.msra.mxu0 %v500
        %1389 = vmatprep.subr.mxu0 0.0
        %1390 = vmatpush1.msra.mxu0 %v501
        %1391 = vmatprep.subr.mxu0 0.0
        %1392 = vmatpush1.msra.mxu0 %v502
        %1393 = vmatprep.subr.mxu0 0.0
        %1394 = vmatpush1.msra.mxu0 %v503
        %1395 = vmatprep.subr.mxu0 0.0
        %1396 = vmatpush1.msra.mxu0 %v504
        %1397 = vmatprep.subr.mxu0 0.0
        %1398 = vmatpush1.msra.mxu0 %v505
        %1399 = vmatprep.subr.mxu0 0.0
        %1400 = vmatpush1.msra.mxu0 %v506
        %1401 = vmatprep.subr.mxu0 0.0
        %1402 = vmatpush1.msra.mxu0 %v507
        %1403 = vmatprep.subr.mxu0 0.0
        %1404 = vmatpush1.msra.mxu0 %v508
        %1405 = vmatprep.subr.mxu0 0.0
        %1406 = vmatpush1.msra.mxu0 %v509
        %1407 = vmatprep.subr.mxu0 0.0
        %1408 = vmatpush1.msra.mxu0 %v510
        %1409 = vmatprep.subr.mxu0 0.0
        %1410 = vmatpush1.msra.mxu0 %v511
        %1411 = vmatprep.subr.mxu0 0.0
        %1412 = vmatpush1.msra.mxu0 %v512
        %1413 = vmatprep.mubr.f32.mxu0 %v779
        %1414 = vmatmul.mubr.f32.gmra.mrb[0].mxu0 %v777
        %v1415 = vpop.f32.mrb[0].mxu0
        %v1416 = vadd.f32 %v1346, %v1415
        %v1417 = vpop.f32.mrb[0].mxu0
        %1418 = vdwg.mxu0
        %1419 = vmatprep.subr.mxu0 0.0
        %1420 = vmatpush1.msra.mxu0 %v513
        %1421 = vmatprep.subr.mxu0 0.0
        %1422 = vmatpush1.msra.mxu0 %v514
        %1423 = vmatprep.subr.mxu0 0.0
        %1424 = vmatpush1.msra.mxu0 %v515
        %1425 = vmatprep.subr.mxu0 0.0
        %1426 = vmatpush1.msra.mxu0 %v516
        %1427 = vmatprep.subr.mxu0 0.0
        %1428 = vmatpush1.msra.mxu0 %v517
        %1429 = vmatprep.subr.mxu0 0.0
        %1430 = vmatpush1.msra.mxu0 %v518
        %1431 = vmatprep.subr.mxu0 0.0
        %1432 = vmatpush1.msra.mxu0 %v519
        %1433 = vmatprep.subr.mxu0 0.0
        %1434 = vmatpush1.msra.mxu0 %v520
        %1435 = vmatprep.subr.mxu0 0.0
        %1436 = vmatpush1.msra.mxu0 %v521
        %1437 = vmatprep.subr.mxu0 0.0
        %1438 = vmatpush1.msra.mxu0 %v522
        %1439 = vmatprep.subr.mxu0 0.0
        %1440 = vmatpush1.msra.mxu0 %v523
        %1441 = vmatprep.subr.mxu0 0.0
        %1442 = vmatpush1.msra.mxu0 %v524
        %1443 = vmatprep.subr.mxu0 0.0
        %1444 = vmatpush1.msra.mxu0 %v525
        %1445 = vmatprep.subr.mxu0 0.0
        %1446 = vmatpush1.msra.mxu0 %v526
        %1447 = vmatprep.subr.mxu0 0.0
        %1448 = vmatpush1.msra.mxu0 %v527
        %1449 = vmatprep.subr.mxu0 0.0
        %1450 = vmatpush1.msra.mxu0 %v528
        %1451 = vmatprep.subr.mxu0 0.0
        %1452 = vmatpush1.msra.mxu0 %v529
        %1453 = vmatprep.subr.mxu0 0.0
        %1454 = vmatpush1.msra.mxu0 %v530
        %1455 = vmatprep.subr.mxu0 0.0
        %1456 = vmatpush1.msra.mxu0 %v531
        %1457 = vmatprep.subr.mxu0 0.0
        %1458 = vmatpush1.msra.mxu0 %v532
        %1459 = vmatprep.subr.mxu0 0.0
        %1460 = vmatpush1.msra.mxu0 %v533
        %1461 = vmatprep.subr.mxu0 0.0
        %1462 = vmatpush1.msra.mxu0 %v534
        %1463 = vmatprep.subr.mxu0 0.0
        %1464 = vmatpush1.msra.mxu0 %v535
        %1465 = vmatprep.subr.mxu0 0.0
        %1466 = vmatpush1.msra.mxu0 %v536
        %1467 = vmatprep.subr.mxu0 0.0
        %1468 = vmatpush1.msra.mxu0 %v537
        %1469 = vmatprep.subr.mxu0 0.0
        %1470 = vmatpush1.msra.mxu0 %v538
        %1471 = vmatprep.subr.mxu0 0.0
        %1472 = vmatpush1.msra.mxu0 %v539
        %1473 = vmatprep.subr.mxu0 0.0
        %1474 = vmatpush1.msra.mxu0 %v540
        %1475 = vmatprep.subr.mxu0 0.0
        %1476 = vmatpush1.msra.mxu0 %v541
        %1477 = vmatprep.subr.mxu0 0.0
        %1478 = vmatpush1.msra.mxu0 %v542
        %1479 = vmatprep.subr.mxu0 0.0
        %1480 = vmatpush1.msra.mxu0 %v543
        %1481 = vmatprep.subr.mxu0 0.0
        %1482 = vmatpush1.msra.mxu0 %v544
        %1483 = vmatprep.mubr.f32.mxu0 %v795
        %1484 = vmatmul.mubr.f32.gmra.mrb[0].mxu0 %v787
        %v1485 = vpop.f32.mrb[0].mxu0
        %v1486 = vadd.f32 %v1416, %v1485
        %v1487 = vpop.f32.mrb[0].mxu0
        %1488 = vdwg.mxu0
        %1489 = vmatprep.subr.mxu0 0.0
        %1490 = vmatpush1.msra.mxu0 %v545
        %1491 = vmatprep.subr.mxu0 0.0
        %1492 = vmatpush1.msra.mxu0 %v546
        %1493 = vmatprep.subr.mxu0 0.0
        %1494 = vmatpush1.msra.mxu0 %v547
        %1495 = vmatprep.subr.mxu0 0.0
        %1496 = vmatpush1.msra.mxu0 %v548
        %1497 = vmatprep.subr.mxu0 0.0
        %1498 = vmatpush1.msra.mxu0 %v549
        %1499 = vmatprep.subr.mxu0 0.0
        %1500 = vmatpush1.msra.mxu0 %v550
        %1501 = vmatprep.subr.mxu0 0.0
        %1502 = vmatpush1.msra.mxu0 %v551
        %1503 = vmatprep.subr.mxu0 0.0
        %1504 = vmatpush1.msra.mxu0 %v552
        %1505 = vmatprep.subr.mxu0 0.0
        %1506 = vmatpush1.msra.mxu0 %v553
        %1507 = vmatprep.subr.mxu0 0.0
        %1508 = vmatpush1.msra.mxu0 %v554
        %1509 = vmatprep.subr.mxu0 0.0
        %1510 = vmatpush1.msra.mxu0 %v555
        %1511 = vmatprep.subr.mxu0 0.0
        %1512 = vmatpush1.msra.mxu0 %v556
        %1513 = vmatprep.subr.mxu0 0.0
        %1514 = vmatpush1.msra.mxu0 %v557
        %1515 = vmatprep.subr.mxu0 0.0
        %1516 = vmatpush1.msra.mxu0 %v558
        %1517 = vmatprep.subr.mxu0 0.0
        %1518 = vmatpush1.msra.mxu0 %v559
        %1519 = vmatprep.subr.mxu0 0.0
        %1520 = vmatpush1.msra.mxu0 %v560
        %1521 = vmatprep.subr.mxu0 0.0
        %1522 = vmatpush1.msra.mxu0 %v561
        %1523 = vmatprep.subr.mxu0 0.0
        %1524 = vmatpush1.msra.mxu0 %v562
        %1525 = vmatprep.subr.mxu0 0.0
        %1526 = vmatpush1.msra.mxu0 %v563
        %1527 = vmatprep.subr.mxu0 0.0
        %1528 = vmatpush1.msra.mxu0 %v564
        %1529 = vmatprep.subr.mxu0 0.0
        %1530 = vmatpush1.msra.mxu0 %v565
        %1531 = vmatprep.subr.mxu0 0.0
        %1532 = vmatpush1.msra.mxu0 %v566
        %1533 = vmatprep.subr.mxu0 0.0
        %1534 = vmatpush1.msra.mxu0 %v567
        %1535 = vmatprep.subr.mxu0 0.0
        %1536 = vmatpush1.msra.mxu0 %v568
        %1537 = vmatprep.subr.mxu0 0.0
        %1538 = vmatpush1.msra.mxu0 %v569
        %1539 = vmatprep.subr.mxu0 0.0
        %1540 = vmatpush1.msra.mxu0 %v570
        %1541 = vmatprep.subr.mxu0 0.0
        %1542 = vmatpush1.msra.mxu0 %v571
        %1543 = vmatprep.subr.mxu0 0.0
        %1544 = vmatpush1.msra.mxu0 %v572
        %1545 = vmatprep.subr.mxu0 0.0
        %1546 = vmatpush1.msra.mxu0 %v573
        %1547 = vmatprep.subr.mxu0 0.0
        %1548 = vmatpush1.msra.mxu0 %v574
        %1549 = vmatprep.subr.mxu0 0.0
        %1550 = vmatpush1.msra.mxu0 %v575
        %1551 = vmatprep.subr.mxu0 0.0
        %1552 = vmatpush1.msra.mxu0 %v576
        %1553 = vmatprep.mubr.f32.mxu0 %v796
        %1554 = vmatmul.mubr.f32.gmra.mrb[0].mxu0 %v794
        %v1555 = vpop.f32.mrb[0].mxu0
        %v1556 = vadd.f32 %v1486, %v1555
        %v1557 = vpop.f32.mrb[0].mxu0
        %1558 = vdwg.mxu0
        %1559 = vmatprep.subr.mxu0 0.0
        %1560 = vmatpush1.msra.mxu0 %v577
        %1561 = vmatprep.subr.mxu0 0.0
        %1562 = vmatpush1.msra.mxu0 %v578
        %1563 = vmatprep.subr.mxu0 0.0
        %1564 = vmatpush1.msra.mxu0 %v579
        %1565 = vmatprep.subr.mxu0 0.0
        %1566 = vmatpush1.msra.mxu0 %v580
        %1567 = vmatprep.subr.mxu0 0.0
        %1568 = vmatpush1.msra.mxu0 %v581
        %1569 = vmatprep.subr.mxu0 0.0
        %1570 = vmatpush1.msra.mxu0 %v582
        %1571 = vmatprep.subr.mxu0 0.0
        %1572 = vmatpush1.msra.mxu0 %v583
        %1573 = vmatprep.subr.mxu0 0.0
        %1574 = vmatpush1.msra.mxu0 %v584
        %1575 = vmatprep.subr.mxu0 0.0
        %1576 = vmatpush1.msra.mxu0 %v585
        %1577 = vmatprep.subr.mxu0 0.0
        %1578 = vmatpush1.msra.mxu0 %v586
        %1579 = vmatprep.subr.mxu0 0.0
        %1580 = vmatpush1.msra.mxu0 %v587
        %1581 = vmatprep.subr.mxu0 0.0
        %1582 = vmatpush1.msra.mxu0 %v588
        %1583 = vmatprep.subr.mxu0 0.0
        %1584 = vmatpush1.msra.mxu0 %v589
        %1585 = vmatprep.subr.mxu0 0.0
        %1586 = vmatpush1.msra.mxu0 %v590
        %1587 = vmatprep.subr.mxu0 0.0
        %1588 = vmatpush1.msra.mxu0 %v591
        %1589 = vmatprep.subr.mxu0 0.0
        %1590 = vmatpush1.msra.mxu0 %v592
        %1591 = vmatprep.subr.mxu0 0.0
        %1592 = vmatpush1.msra.mxu0 %v593
        %1593 = vmatprep.subr.mxu0 0.0
        %1594 = vmatpush1.msra.mxu0 %v594
        %1595 = vmatprep.subr.mxu0 0.0
        %1596 = vmatpush1.msra.mxu0 %v595
        %1597 = vmatprep.subr.mxu0 0.0
        %1598 = vmatpush1.msra.mxu0 %v596
        %1599 = vmatprep.subr.mxu0 0.0
        %1600 = vmatpush1.msra.mxu0 %v597
        %1601 = vmatprep.subr.mxu0 0.0
        %1602 = vmatpush1.msra.mxu0 %v598
        %1603 = vmatprep.subr.mxu0 0.0
        %1604 = vmatpush1.msra.mxu0 %v599
        %1605 = vmatprep.subr.mxu0 0.0
        %1606 = vmatpush1.msra.mxu0 %v600
        %1607 = vmatprep.subr.mxu0 0.0
        %1608 = vmatpush1.msra.mxu0 %v601
        %1609 = vmatprep.subr.mxu0 0.0
        %1610 = vmatpush1.msra.mxu0 %v602
        %1611 = vmatprep.subr.mxu0 0.0
        %1612 = vmatpush1.msra.mxu0 %v603
        %1613 = vmatprep.subr.mxu0 0.0
        %1614 = vmatpush1.msra.mxu0 %v604
        %1615 = vmatprep.subr.mxu0 0.0
        %1616 = vmatpush1.msra.mxu0 %v605
        %1617 = vmatprep.subr.mxu0 0.0
        %1618 = vmatpush1.msra.mxu0 %v606
        %1619 = vmatprep.subr.mxu0 0.0
        %1620 = vmatpush1.msra.mxu0 %v607
        %1621 = vmatprep.subr.mxu0 0.0
        %1622 = vmatpush1.msra.mxu0 %v608
        %1623 = vmatprep.mubr.f32.mxu0 %v812
        %1624 = vmatmul.mubr.f32.gmra.mrb[0].mxu0 %v804
        %v1625 = vpop.f32.mrb[0].mxu0
        %v1626 = vadd.f32 %v1556, %v1625
        %v1627 = vpop.f32.mrb[0].mxu0
        %1628 = vdwg.mxu0
        %1629 = vmatprep.subr.mxu0 0.0
        %1630 = vmatpush1.msra.mxu0 %v609
        %1631 = vmatprep.subr.mxu0 0.0
        %1632 = vmatpush1.msra.mxu0 %v610
        %1633 = vmatprep.subr.mxu0 0.0
        %1634 = vmatpush1.msra.mxu0 %v611
        %1635 = vmatprep.subr.mxu0 0.0
        %1636 = vmatpush1.msra.mxu0 %v612
        %1637 = vmatprep.subr.mxu0 0.0
        %1638 = vmatpush1.msra.mxu0 %v613
        %1639 = vmatprep.subr.mxu0 0.0
        %1640 = vmatpush1.msra.mxu0 %v614
        %1641 = vmatprep.subr.mxu0 0.0
        %1642 = vmatpush1.msra.mxu0 %v615
        %1643 = vmatprep.subr.mxu0 0.0
        %1644 = vmatpush1.msra.mxu0 %v616
        %1645 = vmatprep.subr.mxu0 0.0
        %1646 = vmatpush1.msra.mxu0 %v617
        %1647 = vmatprep.subr.mxu0 0.0
        %1648 = vmatpush1.msra.mxu0 %v618
        %1649 = vmatprep.subr.mxu0 0.0
        %1650 = vmatpush1.msra.mxu0 %v619
        %1651 = vmatprep.subr.mxu0 0.0
        %1652 = vmatpush1.msra.mxu0 %v620
        %1653 = vmatprep.subr.mxu0 0.0
        %1654 = vmatpush1.msra.mxu0 %v621
        %1655 = vmatprep.subr.mxu0 0.0
        %1656 = vmatpush1.msra.mxu0 %v622
        %1657 = vmatprep.subr.mxu0 0.0
        %1658 = vmatpush1.msra.mxu0 %v623
        %1659 = vmatprep.subr.mxu0 0.0
        %1660 = vmatpush1.msra.mxu0 %v624
        %1661 = vmatprep.subr.mxu0 0.0
        %1662 = vmatpush1.msra.mxu0 %v625
        %1663 = vmatprep.subr.mxu0 0.0
        %1664 = vmatpush1.msra.mxu0 %v626
        %1665 = vmatprep.subr.mxu0 0.0
        %1666 = vmatpush1.msra.mxu0 %v627
        %1667 = vmatprep.subr.mxu0 0.0
        %1668 = vmatpush1.msra.mxu0 %v628
        %1669 = vmatprep.subr.mxu0 0.0
        %1670 = vmatpush1.msra.mxu0 %v629
        %1671 = vmatprep.subr.mxu0 0.0
        %1672 = vmatpush1.msra.mxu0 %v630
        %1673 = vmatprep.subr.mxu0 0.0
        %1674 = vmatpush1.msra.mxu0 %v631
        %1675 = vmatprep.subr.mxu0 0.0
        %1676 = vmatpush1.msra.mxu0 %v632
        %1677 = vmatprep.subr.mxu0 0.0
        %1678 = vmatpush1.msra.mxu0 %v633
        %1679 = vmatprep.subr.mxu0 0.0
        %1680 = vmatpush1.msra.mxu0 %v634
        %1681 = vmatprep.subr.mxu0 0.0
        %1682 = vmatpush1.msra.mxu0 %v635
        %1683 = vmatprep.subr.mxu0 0.0
        %1684 = vmatpush1.msra.mxu0 %v636
        %1685 = vmatprep.subr.mxu0 0.0
        %1686 = vmatpush1.msra.mxu0 %v637
        %1687 = vmatprep.subr.mxu0 0.0
        %1688 = vmatpush1.msra.mxu0 %v638
        %1689 = vmatprep.subr.mxu0 0.0
        %1690 = vmatpush1.msra.mxu0 %v639
        %1691 = vmatprep.subr.mxu0 0.0
        %1692 = vmatpush1.msra.mxu0 %v640
        %1693 = vmatprep.mubr.f32.mxu0 %v813
        %1694 = vmatmul.mubr.f32.gmra.mrb[0].mxu0 %v811
        %v1695 = vpop.f32.mrb[0].mxu0
        %v1696 = vadd.f32 %v1626, %v1695
        %v1697 = vpop.f32.mrb[0].mxu0
        %1698 = vdwg.mxu0
        %1699 = vmatprep.subr.mxu0 0.0
        %1700 = vmatpush1.msra.mxu0 %v641
        %1701 = vmatprep.subr.mxu0 0.0
        %1702 = vmatpush1.msra.mxu0 %v642
        %1703 = vmatprep.subr.mxu0 0.0
        %1704 = vmatpush1.msra.mxu0 %v643
        %1705 = vmatprep.subr.mxu0 0.0
        %1706 = vmatpush1.msra.mxu0 %v644
        %1707 = vmatprep.subr.mxu0 0.0
        %1708 = vmatpush1.msra.mxu0 %v645
        %1709 = vmatprep.subr.mxu0 0.0
        %1710 = vmatpush1.msra.mxu0 %v646
        %1711 = vmatprep.subr.mxu0 0.0
        %1712 = vmatpush1.msra.mxu0 %v647
        %1713 = vmatprep.subr.mxu0 0.0
        %1714 = vmatpush1.msra.mxu0 %v648
        %1715 = vmatprep.subr.mxu0 0.0
        %1716 = vmatpush1.msra.mxu0 %v649
        %1717 = vmatprep.subr.mxu0 0.0
        %1718 = vmatpush1.msra.mxu0 %v650
        %1719 = vmatprep.subr.mxu0 0.0
        %1720 = vmatpush1.msra.mxu0 %v651
        %1721 = vmatprep.subr.mxu0 0.0
        %1722 = vmatpush1.msra.mxu0 %v652
        %1723 = vmatprep.subr.mxu0 0.0
        %1724 = vmatpush1.msra.mxu0 %v653
        %1725 = vmatprep.subr.mxu0 0.0
        %1726 = vmatpush1.msra.mxu0 %v654
        %1727 = vmatprep.subr.mxu0 0.0
        %1728 = vmatpush1.msra.mxu0 %v655
        %1729 = vmatprep.subr.mxu0 0.0
        %1730 = vmatpush1.msra.mxu0 %v656
        %1731 = vmatprep.subr.mxu0 0.0
        %1732 = vmatpush1.msra.mxu0 %v657
        %1733 = vmatprep.subr.mxu0 0.0
        %1734 = vmatpush1.msra.mxu0 %v658
        %1735 = vmatprep.subr.mxu0 0.0
        %1736 = vmatpush1.msra.mxu0 %v659
        %1737 = vmatprep.subr.mxu0 0.0
        %1738 = vmatpush1.msra.mxu0 %v660
        %1739 = vmatprep.subr.mxu0 0.0
        %1740 = vmatpush1.msra.mxu0 %v661
        %1741 = vmatprep.subr.mxu0 0.0
        %1742 = vmatpush1.msra.mxu0 %v662
        %1743 = vmatprep.subr.mxu0 0.0
        %1744 = vmatpush1.msra.mxu0 %v663
        %1745 = vmatprep.subr.mxu0 0.0
        %1746 = vmatpush1.msra.mxu0 %v664
        %1747 = vmatprep.subr.mxu0 0.0
        %1748 = vmatpush1.msra.mxu0 %v665
        %1749 = vmatprep.subr.mxu0 0.0
        %1750 = vmatpush1.msra.mxu0 %v666
        %1751 = vmatprep.subr.mxu0 0.0
        %1752 = vmatpush1.msra.mxu0 %v667
        %1753 = vmatprep.subr.mxu0 0.0
        %1754 = vmatpush1.msra.mxu0 %v668
        %1755 = vmatprep.subr.mxu0 0.0
        %1756 = vmatpush1.msra.mxu0 %v669
        %1757 = vmatprep.subr.mxu0 0.0
        %1758 = vmatpush1.msra.mxu0 %v670
        %1759 = vmatprep.subr.mxu0 0.0
        %1760 = vmatpush1.msra.mxu0 %v671
        %1761 = vmatprep.subr.mxu0 0.0
        %1762 = vmatpush1.msra.mxu0 %v672
        %1763 = vmatprep.mubr.f32.mxu0 %v829
        %1764 = vmatmul.mubr.f32.gmra.mrb[0].mxu0 %v821
        %v1765 = vpop.f32.mrb[0].mxu0
        %v1766 = vadd.f32 %v1696, %v1765
        %v1767 = vpop.f32.mrb[0].mxu0
        %1768 = vdwg.mxu0
        %1769 = vmatprep.subr.mxu0 0.0
        %1770 = vmatpush1.msra.mxu0 %v673
        %1771 = vmatprep.subr.mxu0 0.0
        %1772 = vmatpush1.msra.mxu0 %v674
        %1773 = vmatprep.subr.mxu0 0.0
        %1774 = vmatpush1.msra.mxu0 %v675
        %1775 = vmatprep.subr.mxu0 0.0
        %1776 = vmatpush1.msra.mxu0 %v676
        %1777 = vmatprep.subr.mxu0 0.0
        %1778 = vmatpush1.msra.mxu0 %v677
        %1779 = vmatprep.subr.mxu0 0.0
        %1780 = vmatpush1.msra.mxu0 %v678
        %1781 = vmatprep.subr.mxu0 0.0
        %1782 = vmatpush1.msra.mxu0 %v679
        %1783 = vmatprep.subr.mxu0 0.0
        %1784 = vmatpush1.msra.mxu0 %v680
        %1785 = vmatprep.subr.mxu0 0.0
        %1786 = vmatpush1.msra.mxu0 %v681
        %1787 = vmatprep.subr.mxu0 0.0
        %1788 = vmatpush1.msra.mxu0 %v682
        %1789 = vmatprep.subr.mxu0 0.0
        %1790 = vmatpush1.msra.mxu0 %v683
        %1791 = vmatprep.subr.mxu0 0.0
        %1792 = vmatpush1.msra.mxu0 %v684
        %1793 = vmatprep.subr.mxu0 0.0
        %1794 = vmatpush1.msra.mxu0 %v685
        %1795 = vmatprep.subr.mxu0 0.0
        %1796 = vmatpush1.msra.mxu0 %v686
        %1797 = vmatprep.subr.mxu0 0.0
        %1798 = vmatpush1.msra.mxu0 %v687
        %1799 = vmatprep.subr.mxu0 0.0
        %1800 = vmatpush1.msra.mxu0 %v688
        %1801 = vmatprep.subr.mxu0 0.0
        %1802 = vmatpush1.msra.mxu0 %v689
        %1803 = vmatprep.subr.mxu0 0.0
        %1804 = vmatpush1.msra.mxu0 %v690
        %1805 = vmatprep.subr.mxu0 0.0
        %1806 = vmatpush1.msra.mxu0 %v691
        %1807 = vmatprep.subr.mxu0 0.0
        %1808 = vmatpush1.msra.mxu0 %v692
        %1809 = vmatprep.subr.mxu0 0.0
        %1810 = vmatpush1.msra.mxu0 %v693
        %1811 = vmatprep.subr.mxu0 0.0
        %1812 = vmatpush1.msra.mxu0 %v694
        %1813 = vmatprep.subr.mxu0 0.0
        %1814 = vmatpush1.msra.mxu0 %v695
        %1815 = vmatprep.subr.mxu0 0.0
        %1816 = vmatpush1.msra.mxu0 %v696
        %1817 = vmatprep.subr.mxu0 0.0
        %1818 = vmatpush1.msra.mxu0 %v697
        %1819 = vmatprep.subr.mxu0 0.0
        %1820 = vmatpush1.msra.mxu0 %v698
        %1821 = vmatprep.subr.mxu0 0.0
        %1822 = vmatpush1.msra.mxu0 %v699
        %1823 = vmatprep.subr.mxu0 0.0
        %1824 = vmatpush1.msra.mxu0 %v700
        %1825 = vmatprep.subr.mxu0 0.0
        %1826 = vmatpush1.msra.mxu0 %v701
        %1827 = vmatprep.subr.mxu0 0.0
        %1828 = vmatpush1.msra.mxu0 %v702
        %1829 = vmatprep.subr.mxu0 0.0
        %1830 = vmatpush1.msra.mxu0 %v703
        %1831 = vmatprep.subr.mxu0 0.0
        %1832 = vmatpush1.msra.mxu0 %v704
        %1833 = vmatprep.mubr.f32.mxu0 %v830
        %1834 = vmatmul.mubr.f32.gmra.mrb[0].mxu0 %v828
        %v1835 = vpop.f32.mrb[0].mxu0
        %v1836 = vadd.f32 %v1766, %v1835
        %v1837 = vpop.f32.mrb[0].mxu0
        %1838 = vdwg.mxu0
        %v1839 = vadd.f32 %v249, %v1836
        %1840 = vst [vmem:[#allocation2] sm:$0x3] %v1839
        %p1841 = scmp.eq.s32.totalorder %s24, 13
        // Predicated region
        $region45: #{planet_densenet_head.1} parent=31 // pred_check
          %p1842 = pneg %p1841
        $region46: #{planet_densenet_head.1} parent=31 // pred_check_branch
          %1844 = sbr.rel (%p1842) target = $region48
        $region47: #{planet_densenet_head.1} parent=31 // pred_region
          %v1845 = vld [vmem:[#allocation2] sm:$0x3]
          %v1846 = vld [vmem:[#allocation6] sm:$0x1]
          %v1848 = vlaneseq
          %v1849 = vshrl.u32 %v1848, 7
          %v1850 = vsub.s32 0, %v1849
          %v1851 = vrot.slane %v1846, %v1850
          %v1853 = vadd.f32 %v1845, %v1851
          %v1854 = vsub.f32 0.0, %v1853
          %v1855 = vmul.f32 %v1854, 1.442695
          %v1856 = vpow.pop %v1855
          %v1857 = vadd.f32 %v1856, 1.0
          %v1858 = vrcp.pop %v1857
          %v1859 = vmul.f32 1.0, %v1858
          %1860 = vst [vmem:[#allocation8] sm:$0x3] %v1859
        $region48: #{planet_densenet_head.1} parent=31 // pred_fallthru
          _
        // Predicated region
        $region49: #{planet_densenet_head.1} parent=31 // pred_check
          %p1861 = pneg %p124
        $region50: #{planet_densenet_head.1} parent=31 // pred_check_branch
          %1863 = sbr.rel (%p1861) target = $region52
        $region51: #{planet_densenet_head.1} parent=31 // pred_region
          %s1865 = ssub.s32 32, 32
          %1866 = vsyncadd [#allocation5], %s1865
          %s1867 = smul.addr %s23, 32
          %s1868 = scalar_lea.hbm %s3, %s1867
          %s1870 = sshll.u32 [#allocation8], 4
          %s1871 = int_to_ptr.vmem [resolvable:$true] %s1870
          %1873 = dma.vmem_to_hbm [thread:$0]  %s1871, 32, %s1868, [#allocation5]
        $region52: #{planet_densenet_head.1} parent=31 // pred_fallthru
          _
        // Predicated region
        $region53: #{planet_densenet_head.1} parent=31 // pred_check
          %p1874 = pneg %p124
        $region54: #{planet_densenet_head.1} parent=31 // pred_check_branch
          %1876 = sbr.rel (%p1874) target = $region56
        $region55: #{planet_densenet_head.1} parent=31 // pred_region
          %1877 = dma.done [#allocation5], 32
        $region56: #{planet_densenet_head.1} parent=31 // pred_fallthru
          _
      $region32: #{planet_densenet_head.1} parent=5 // pred_fallthru
        _
      %p1878 = scmp.le.s32.totalorder 2, %s14
      // Predicated region
      $region57: #{planet_densenet_head.1} parent=5 // pred_check
        %p1879 = pneg %p1878
      $region58: #{planet_densenet_head.1} parent=5 // pred_check_branch
        %1881 = sbr.rel (%p1879) target = $region60
      $region59: #{planet_densenet_head.1} parent=5 // pred_region
        %s1882 = ssub.s32 %s14, 2
      $region60: #{planet_densenet_head.1} parent=5 // pred_fallthru
        _
    $region6: #{planet_densenet_head.1} parent=1 // loop_footer
      %s18 = sadd.s32 1, %s14
    $region7: #{planet_densenet_head.1} parent=1 // loop_footer_branch
      %13 = sbr.rel target = $region3
    $region8: #{planet_densenet_head.1} parent=1 // loop_exit
      _
    %1883 = vsyncpa [#allocation4], 1
    %s1884 = scalar_lea.sflag [#allocation4], 1
    %1885 = vsyncpa %s1884, 1
    %1886 = vsyncpa [#allocation7], 1
    %1887 = vsyncpa [#allocation5], 1
    %s1888 = scalar_lea.sflag [#allocation5], 1
    %1889 = vsyncpa %s1888, 1

</llo_original>
